<compile_context>
chip_gen: v5e
topology: v5e:2x2
jax: 0.10.0
libtpu: 0.0.40
codegen_flags: <defaults>
</compile_context>

<pallas_src>
import functools

import jax
import jax.numpy as jnp
from jax.experimental import pallas as pl
from jax.experimental.pallas import tpu as pltpu


_LANE = 128


def _round_up(v, m):
    return (v + m - 1) // m * m


def _num_tensorcores():
    """2 on v7x-style parts (2 TensorCores/chip), else 1 (v5e/v6e)."""
    try:
        kind = jax.devices()[0].device_kind.lower()
    except Exception:
        return 1
    return 2 if ("v7" in kind or "7x" in kind) else 1


def _vmem_limit_bytes():
    """Scoped-VMEM limit: 3/4 of physical VMEM, capped at 96 MiB."""
    phys = 64 * 1024 * 1024                      # conservative fallback (v7x-sized)
    try:
        info = pltpu.get_tpu_info()
        phys = int(getattr(info, "vmem_capacity_bytes", phys))
    except Exception:
        pass
    return int(min((phys * 3) // 10 * 10 // 4, 96 * 1024 * 1024))


def _pick_batch_block(n, hw, c, kp, k_out, in_item, out_item, vmem_limit,
                      num_tc, with_features):
    """Images per grid step.

    Largest block whose double-buffered x / feature tiles, resident weight and
    in-kernel f32 temporaries fit the scoped-VMEM budget.  On multi-TC parts
    (v7x) keep at least `num_tc` grid steps so both cores get work.  B does
    not need to divide N (the grid uses cdiv; the ragged last block is masked
    by Pallas).
    """
    weight_bytes = 2 * kp * c * in_item + kp * c * 4    # weight block (+ f32 copy)
    per_image = 2 * c * hw * in_item                    # x block, double buffered
    per_image += 2 * kp * 4                             # logits block
    if with_features:
        per_image += 2 * k_out * hw * out_item          # feature block, double buffered
        per_image += 2 * kp * hw * 4                    # f32 matmul result + cast copy
    budget = (vmem_limit * 7) // 10 - weight_bytes      # leave compiler headroom
    max_b = max(1, budget // max(per_image, 1))
    b = min(n, max_b)
    if num_tc > 1 and n > 1:
        b = min(b, pl.cdiv(n, num_tc))                  # >= num_tc grid steps (v7x)
    return max(int(b), 1)


def _cam_kernel(x_ref, w_ref, feat_ref, logits_ref):
    # x_ref:      (B, C, HW)  stage-5 features, NCHW layout (HW = H*W)
    # w_ref:      (Kp, C)     zero-padded 1x1 conv weight
    # feat_ref:   (B, K, HW)  CAM features, NCHW layout (K un-padded)
    # logits_ref: (B, Kp, 1)  per-image logits, column layout
    n_img = x_ref.shape[0]
    k = feat_ref.shape[1]
    w = w_ref[...]                                       # hoisted, loop-invariant

    @pl.loop(0, n_img)
    def _(b):
        feats = jnp.dot(w, x_ref[b],                     # (Kp, HW) f32 MXU accum
                        preferred_element_type=jnp.float32)
        feat_ref[pl.ds(b, 1)] = feats[None, :k, :].astype(feat_ref.dtype)
        # GAP over spatial positions of the f32 accumulator (matches PyTorch
        # f32 GAP; avoids re-widening the stored, possibly-bf16 features).
        logits_ref[pl.ds(b, 1)] = jnp.mean(feats, axis=1, keepdims=True)[None]


def _nocam_kernel(x_ref, w_ref, logits_ref):
    # x_ref:      (B, C, HW)
    # w_ref:      (Kp, C)
    # logits_ref: (B, Kp, 1)
    n_img = x_ref.shape[0]
    w = w_ref[...].astype(jnp.float32)                   # hoisted, loop-invariant

    @pl.loop(0, n_img)
    def _(b):
        # GAP first (f32 accumulation, no f32 copy of the whole slab), then a
        # tiny (Kp, C) @ (C, 1) matvec -- this path is purely x-read-bound.
        pooled = jnp.mean(x_ref[b], axis=1, keepdims=True,
                          dtype=jnp.float32)             # (C, 1)
        logits_ref[pl.ds(b, 1)] = jnp.dot(
            w, pooled, preferred_element_type=jnp.float32)[None]   # (1, Kp, 1)


@functools.partial(jax.jit, static_argnames=("with_cam", "compute_dtype"))
def classifier_forward(x_nchw, w_kc, with_cam=False, compute_dtype=None):
    """Forward pass of the Classifier head.

    x_nchw:        (N, C, H, W) backbone (stage-5) features, NCHW like PyTorch.
    w_kc:          (K, C) == Conv2d(C, K, 1, bias=False).weight[:, :, 0, 0]
    compute_dtype: optional (e.g. jnp.bfloat16) to halve HBM traffic on this
                   bandwidth-bound head (recommended on v5e); matmul still
                   accumulates in f32 and logits stay f32.  Returned CAM
                   features take this dtype.
    """
    N, C, H, W = x_nchw.shape
    K = w_kc.shape[0]
    HW = H * W
    Kp = _round_up(K, _LANE)                  # lane-dense / MXU-aligned class dim

    if compute_dtype is not None:
        x_nchw = x_nchw.astype(compute_dtype)
        w_kc = w_kc.astype(compute_dtype)

    # NCHW-direct: only free reshapes + a tiny weight pad outside the kernel.
    x_flat = x_nchw.reshape(N, C, HW)
    w_pad = jnp.pad(w_kc, ((0, Kp - K), (0, 0)))          # (Kp, C)

    in_item = jnp.dtype(x_flat.dtype).itemsize
    num_tc = _num_tensorcores()
    vmem_limit = _vmem_limit_bytes()
    B = _pick_batch_block(N, HW, C, Kp, K, in_item, in_item, vmem_limit,
                          num_tc, with_features=with_cam)
    grid = (pl.cdiv(N, B),)

    compiler_params = pltpu.CompilerParams(
        dimension_semantics=("parallel",),
        vmem_limit_bytes=vmem_limit,
    )

    x_bytes = N * C * HW * in_item
    w_bytes = Kp * C * in_item
    logit_bytes = N * Kp * 4

    x_spec = pl.BlockSpec((B, C, HW), lambda n: (n, 0, 0))
    w_spec = pl.BlockSpec((Kp, C), lambda n: (0, 0))
    logits_spec = pl.BlockSpec((B, Kp, 1), lambda n: (n, 0, 0))

    if with_cam:
        cost = pl.CostEstimate(
            flops=2 * N * C * HW * Kp,
            transcendentals=0,
            bytes_accessed=x_bytes + w_bytes + N * K * HW * in_item + logit_bytes,
        )
        feat_flat, logits_col = pl.pallas_call(
            _cam_kernel,
            out_shape=(
                jax.ShapeDtypeStruct((N, K, HW), x_flat.dtype),
                jax.ShapeDtypeStruct((N, Kp, 1), jnp.float32),
            ),
            grid_spec=pltpu.PrefetchScalarGridSpec(
                num_scalar_prefetch=0,
                grid=grid,
                in_specs=[x_spec, w_spec],
                out_specs=[
                    pl.BlockSpec((B, K, HW), lambda n: (n, 0, 0)),
                    logits_spec,
                ],
            ),
            compiler_params=compiler_params,
            cost_estimate=cost,
        )(x_flat, w_pad)
        features = feat_flat.reshape(N, K, H, W)          # free reshape, already NCHW
        logits = logits_col[:, :K, 0]
        mask = None
        return logits, features, mask
    else:
        cost = pl.CostEstimate(
            flops=N * C * HW + 2 * N * C * Kp,
            transcendentals=0,
            bytes_accessed=x_bytes + w_bytes + logit_bytes,
        )
        logits_col = pl.pallas_call(
            _nocam_kernel,
            out_shape=jax.ShapeDtypeStruct((N, Kp, 1), jnp.float32),
            grid_spec=pltpu.PrefetchScalarGridSpec(
                num_scalar_prefetch=0,
                grid=grid,
                in_specs=[x_spec, w_spec],
                out_specs=logits_spec,
            ),
            compiler_params=compiler_params,
            cost_estimate=cost,
        )(x_flat, w_pad)
        return logits_col[:, :K, 0]                        # .view(-1, num_classes)


def _reference(x_nchw, w_kc, with_cam):
    # pure-JAX reference of the PyTorch semantics
    x_nchw = x_nchw.astype(jnp.float32)
    w_kc = w_kc.astype(jnp.float32)
    if with_cam:
        feats = jnp.einsum("nchw,kc->nkhw", x_nchw, w_kc)
        logits = jnp.mean(feats, axis=(2, 3))
        return logits, feats
    pooled = jnp.mean(x_nchw, axis=(2, 3))                 # GAP keepdims -> 1x1 conv
    return pooled @ w_kc.T


if __name__ == "__main__":
    key = jax.random.PRNGKey(0)
    kx, kw = jax.random.split(key)

    N, C, H, W = 2, 2048, 8, 8       # stage-5 features: 2048 channels (resnet path)
    K = 19                           # HPA: 19 classes

    x = jax.random.normal(kx, (N, C, H, W), dtype=jnp.float32)
    # deterministic kaiming-normal-like init for the 1x1 conv weight (K, C)
    w = jax.random.normal(kw, (K, C), dtype=jnp.float32) * jnp.sqrt(2.0 / C)

    # with_cam=True path (f32)
    logits_cam, features, mask = classifier_forward(x, w, with_cam=True)
    jax.block_until_ready((logits_cam, features))
    ref_logits_cam, ref_feats = _reference(x, w, True)
    assert logits_cam.shape == (N, K)
    assert features.shape == (N, K, H, W)
    assert mask is None
    assert jnp.allclose(logits_cam, ref_logits_cam, atol=1e-3, rtol=1e-3)
    assert jnp.allclose(features, ref_feats, atol=1e-3, rtol=1e-3)

    # with_cam=False path (f32)
    logits = classifier_forward(x, w, with_cam=False)
    jax.block_until_ready(logits)
    ref_logits = _reference(x, w, False)
    assert logits.shape == (N, K)
    assert jnp.allclose(logits, ref_logits, atol=1e-3, rtol=1e-3)

    # optional bf16 compute path (bandwidth optimization); loose check against
    # a reference evaluated on bf16-rounded inputs.
    logits_bf, feats_bf, _ = classifier_forward(
        x, w, with_cam=True, compute_dtype=jnp.bfloat16)
    jax.block_until_ready((logits_bf, feats_bf))
    ref_l_bf, ref_f_bf = _reference(x.astype(jnp.bfloat16),
                                    w.astype(jnp.bfloat16), True)
    assert jnp.allclose(logits_bf, ref_l_bf, atol=5e-2, rtol=5e-2)
    assert jnp.allclose(feats_bf.astype(jnp.float32), ref_f_bf,
                        atol=5e-2, rtol=5e-2)

    print("KERNEL_OK")
</pallas_src>

<mosaic_0001>
module attributes {stable_mosaic.version = 11 : i64} {
  func.func @_cam_kernel(%arg0: i32, %arg1: memref<2x2048x64xf32, #tpu.memory_space<vmem>>, %arg2: memref<128x2048xf32, #tpu.memory_space<vmem>>, %arg3: memref<2x19x64xf32, #tpu.memory_space<vmem>>, %arg4: memref<2x128x1xf32, #tpu.memory_space<vmem>>) attributes {dimension_semantics = [#tpu.dimension_semantics<parallel>], iteration_bounds = array<i64: 1>, scalar_prefetch = 0 : i64, scratch_operands = 0 : i64, tpu.core_type = #tpu.core_type<tc>, window_params = [{transform_indices = @transform_0, window_bounds = array<i64: 2, 2048, 64>}, {pipeline_mode = #tpu.pipeline_mode<synchronous>, transform_indices = @transform_1, window_bounds = array<i64: 128, 2048>}, {transform_indices = @transform_2, window_bounds = array<i64: 2, 19, 64>}, {transform_indices = @transform_3, window_bounds = array<i64: 2, 128, 1>}]} {
    %c0 = arith.constant 0 : index
    %c0_0 = arith.constant 0 : index
    %0 = vector.load %arg2[%c0, %c0_0] : memref<128x2048xf32, #tpu.memory_space<vmem>>, vector<128x2048xf32>
    %c0_i32 = arith.constant 0 : i32
    %c2_i32 = arith.constant 2 : i32
    %1 = arith.addi %c0_i32, %c2_i32 : i32
    %c1_i32 = arith.constant 1 : i32
    scf.for %arg5 = %c0_i32 to %1 step %c1_i32  : i32 {
      %c1_i32_2 = arith.constant 1 : i32
      %2 = arith.muli %arg5, %c1_i32_2 : i32
      %c0_i32_3 = arith.constant 0 : i32
      %3 = arith.addi %c0_i32_3, %2 : i32
      %4 = arith.index_cast %3 : i32 to index
      %c0_4 = arith.constant 0 : index
      %c0_5 = arith.constant 0 : index
      %5 = vector.load %arg1[%4, %c0_4, %c0_5] : memref<2x2048x64xf32, #tpu.memory_space<vmem>>, vector<1x2048x64xf32>
      %6 = vector.shape_cast %5 : vector<1x2048x64xf32> to vector<2048x64xf32>
      %cst = arith.constant dense<0.000000e+00> : vector<128x64xf32>
      %7 = tpu.matmul %0, %6, %cst {dimension_numbers = #tpu.dot_dimension_numbers<[1], [0], [0], [1], [0, 0, 1, 1], [], []>} : vector<128x2048xf32>, vector<2048x64xf32>, vector<128x64xf32> -> vector<128x64xf32>
      %8 = vector.extract_strided_slice %7 {offsets = [0, 0], sizes = [19, 64], strides = [1, 1]} : vector<128x64xf32> to vector<19x64xf32>
      %9 = vector.shape_cast %8 : vector<19x64xf32> to vector<1x19x64xf32>
      %10 = arith.index_cast %3 : i32 to index
      %c0_6 = arith.constant 0 : index
      %c0_7 = arith.constant 0 : index
      %11 = vector.load %arg3[%10, %c0_6, %c0_7] : memref<2x19x64xf32, #tpu.memory_space<vmem>>, vector<1x19x64xf32>
      tpu.vector_store %arg3[%10, %c0_6, %c0_7], %9 {strides = array<i32>} : memref<2x19x64xf32, #tpu.memory_space<vmem>>, vector<1x19x64xf32>,
      %cst_8 = arith.constant dense<0.000000e+00> : vector<128xf32>
      %12 = vector.multi_reduction <add>, %7, %cst_8 [1] : vector<128x64xf32> to vector<128xf32>
      %13 = vector.shape_cast %12 : vector<128xf32> to vector<128x1xf32>
      %cst_9 = arith.constant 6.400000e+01 : f32
      %14 = vector.broadcast %cst_9 : f32 to vector<128x1xf32>
      %15 = arith.divf %13, %14 : vector<128x1xf32>
      %16 = vector.shape_cast %15 : vector<128x1xf32> to vector<1x128x1xf32>
      %17 = arith.index_cast %3 : i32 to index
      %c0_10 = arith.constant 0 : index
      %c0_11 = arith.constant 0 : index
      %18 = vector.load %arg4[%17, %c0_10, %c0_11] : memref<2x128x1xf32, #tpu.memory_space<vmem>>, vector<1x128x1xf32>
      tpu.vector_store %arg4[%17, %c0_10, %c0_11], %16 {strides = array<i32>} : memref<2x128x1xf32, #tpu.memory_space<vmem>>, vector<1x128x1xf32>,
    }
    %c2_i32_1 = arith.constant 2 : i32
    return
  }
  func.func @transform_0(%arg0: i32) -> (i32, i32, i32) {
    %c0_i32 = arith.constant 0 : i32
    %c0_i32_0 = arith.constant 0 : i32
    %c0_i32_1 = arith.constant 0 : i32
    return %arg0, %c0_i32, %c0_i32_0 : i32, i32, i32
  }
  func.func @transform_1(%arg0: i32) -> (i32, i32) {
    %c0_i32 = arith.constant 0 : i32
    %c0_i32_0 = arith.constant 0 : i32
    %c0_i32_1 = arith.constant 0 : i32
    return %c0_i32, %c0_i32_0 : i32, i32
  }
  func.func @transform_2(%arg0: i32) -> (i32, i32, i32) {
    %c0_i32 = arith.constant 0 : i32
    %c0_i32_0 = arith.constant 0 : i32
    %c0_i32_1 = arith.constant 0 : i32
    return %arg0, %c0_i32, %c0_i32_0 : i32, i32, i32
  }
  func.func @transform_3(%arg0: i32) -> (i32, i32, i32) {
    %c0_i32 = arith.constant 0 : i32
    %c0_i32_0 = arith.constant 0 : i32
    %c0_i32_1 = arith.constant 0 : i32
    return %arg0, %c0_i32, %c0_i32_0 : i32, i32, i32
  }
}

</mosaic_0001>

<llo_original>
// kernel: classifier_forward.1
$region0: #{classifier_forward.1}
  #allocation0 [shape = 'u32[]', space=smem, size = 0x4, offset = 0x4, fixed_abs, tag = 'smem constant byte address 0x4 - core index']
  #allocation1 [shape = 'u32[72,128]{1,0:T(1,128)}', space=vmem, size = 0x9000, scoped, tag = 'internal scratch']
  %s0 = inlined_call_operand.vmem [shape: f32[2,2048,64], index: 0, kind: input, shape index: {}]
  %s1 = inlined_call_operand.vmem [shape: f32[128,2048], index: 1, kind: input, shape index: {}]
  %s2 = inlined_call_operand.vmem [shape: f32[2,19,64], index: 2, kind: output, shape index: {0}]
  %s3 = inlined_call_operand.vmem [shape: f32[2,128,1], index: 3, kind: output, shape index: {1}]
  %4 = xla_tuple %s2, %s3
  %s5 = sld [smem:[#allocation0]]
  $region33: #{classifier_forward.1} parent=0
    _
  %s7 = ssub.s32 1, %s5
  %s8 = scalar_select 0, %s7, %s5
  // Predicated region
  $region2: #{classifier_forward.1} parent=0 // pred_check
    _
  $region3: #{classifier_forward.1} parent=0 // pred_check_branch
    %10 = sbr.rel (0) target = $region5
  $region4: #{classifier_forward.1} parent=0 // pred_region
    _
  $region5: #{classifier_forward.1} parent=0 // pred_fallthru
    _
  // Predicated region
  $region6: #{classifier_forward.1} parent=0 // pred_check
    _
  $region7: #{classifier_forward.1} parent=0 // pred_check_branch
    %12 = sbr.rel (0) target = $region9
  $region8: #{classifier_forward.1} parent=0 // pred_region
    _
  $region9: #{classifier_forward.1} parent=0 // pred_fallthru
    _
  %v13 = vld [vmem:[%s1] sm:$0xff]
  %v14 = vld [vmem:[%s1 + $0x8] sm:$0xff]
  %v15 = vld [vmem:[%s1 + $0x10] sm:$0xff]
  %v16 = vld [vmem:[%s1 + $0x18] sm:$0xff]
  %v17 = vld [vmem:[%s1 + $0x20] sm:$0xff]
  %v18 = vld [vmem:[%s1 + $0x28] sm:$0xff]
  %v19 = vld [vmem:[%s1 + $0x30] sm:$0xff]
  %v20 = vld [vmem:[%s1 + $0x38] sm:$0xff]
  %v21 = vld [vmem:[%s1 + $0x40] sm:$0xff]
  %v22 = vld [vmem:[%s1 + $0x48] sm:$0xff]
  %v23 = vld [vmem:[%s1 + $0x50] sm:$0xff]
  %v24 = vld [vmem:[%s1 + $0x58] sm:$0xff]
  %v25 = vld [vmem:[%s1 + $0x60] sm:$0xff]
  %v26 = vld [vmem:[%s1 + $0x68] sm:$0xff]
  %v27 = vld [vmem:[%s1 + $0x70] sm:$0xff]
  %v28 = vld [vmem:[%s1 + $0x78] sm:$0xff]
  %v29 = vld [vmem:[%s1 + $0x80] sm:$0xff]
  %v30 = vld [vmem:[%s1 + $0x88] sm:$0xff]
  %v31 = vld [vmem:[%s1 + $0x90] sm:$0xff]
  %v32 = vld [vmem:[%s1 + $0x98] sm:$0xff]
  %v33 = vld [vmem:[%s1 + $0xa0] sm:$0xff]
  %v34 = vld [vmem:[%s1 + $0xa8] sm:$0xff]
  %v35 = vld [vmem:[%s1 + $0xb0] sm:$0xff]
  %v36 = vld [vmem:[%s1 + $0xb8] sm:$0xff]
  %v37 = vld [vmem:[%s1 + $0xc0] sm:$0xff]
  %v38 = vld [vmem:[%s1 + $0xc8] sm:$0xff]
  %v39 = vld [vmem:[%s1 + $0xd0] sm:$0xff]
  %v40 = vld [vmem:[%s1 + $0xd8] sm:$0xff]
  %v41 = vld [vmem:[%s1 + $0xe0] sm:$0xff]
  %v42 = vld [vmem:[%s1 + $0xe8] sm:$0xff]
  %v43 = vld [vmem:[%s1 + $0xf0] sm:$0xff]
  %v44 = vld [vmem:[%s1 + $0xf8] sm:$0xff]
  %v45 = vld [vmem:[%s1 + $0x100] sm:$0xff]
  %v46 = vld [vmem:[%s1 + $0x108] sm:$0xff]
  %v47 = vld [vmem:[%s1 + $0x110] sm:$0xff]
  %v48 = vld [vmem:[%s1 + $0x118] sm:$0xff]
  %v49 = vld [vmem:[%s1 + $0x120] sm:$0xff]
  %v50 = vld [vmem:[%s1 + $0x128] sm:$0xff]
  %v51 = vld [vmem:[%s1 + $0x130] sm:$0xff]
  %v52 = vld [vmem:[%s1 + $0x138] sm:$0xff]
  %v53 = vld [vmem:[%s1 + $0x140] sm:$0xff]
  %v54 = vld [vmem:[%s1 + $0x148] sm:$0xff]
  %v55 = vld [vmem:[%s1 + $0x150] sm:$0xff]
  %v56 = vld [vmem:[%s1 + $0x158] sm:$0xff]
  %v57 = vld [vmem:[%s1 + $0x160] sm:$0xff]
  %v58 = vld [vmem:[%s1 + $0x168] sm:$0xff]
  %v59 = vld [vmem:[%s1 + $0x170] sm:$0xff]
  %v60 = vld [vmem:[%s1 + $0x178] sm:$0xff]
  %v61 = vld [vmem:[%s1 + $0x180] sm:$0xff]
  %v62 = vld [vmem:[%s1 + $0x188] sm:$0xff]
  %v63 = vld [vmem:[%s1 + $0x190] sm:$0xff]
  %v64 = vld [vmem:[%s1 + $0x198] sm:$0xff]
  %v65 = vld [vmem:[%s1 + $0x1a0] sm:$0xff]
  %v66 = vld [vmem:[%s1 + $0x1a8] sm:$0xff]
  %v67 = vld [vmem:[%s1 + $0x1b0] sm:$0xff]
  %v68 = vld [vmem:[%s1 + $0x1b8] sm:$0xff]
  %v69 = vld [vmem:[%s1 + $0x1c0] sm:$0xff]
  %v70 = vld [vmem:[%s1 + $0x1c8] sm:$0xff]
  %v71 = vld [vmem:[%s1 + $0x1d0] sm:$0xff]
  %v72 = vld [vmem:[%s1 + $0x1d8] sm:$0xff]
  %v73 = vld [vmem:[%s1 + $0x1e0] sm:$0xff]
  %v74 = vld [vmem:[%s1 + $0x1e8] sm:$0xff]
  %v75 = vld [vmem:[%s1 + $0x1f0] sm:$0xff]
  %v76 = vld [vmem:[%s1 + $0x1f8] sm:$0xff]
  %v77 = vld [vmem:[%s1 + $0x200] sm:$0xff]
  %v78 = vld [vmem:[%s1 + $0x208] sm:$0xff]
  %v79 = vld [vmem:[%s1 + $0x210] sm:$0xff]
  %v80 = vld [vmem:[%s1 + $0x218] sm:$0xff]
  %v81 = vld [vmem:[%s1 + $0x220] sm:$0xff]
  %v82 = vld [vmem:[%s1 + $0x228] sm:$0xff]
  %v83 = vld [vmem:[%s1 + $0x230] sm:$0xff]
  %v84 = vld [vmem:[%s1 + $0x238] sm:$0xff]
  %v85 = vld [vmem:[%s1 + $0x240] sm:$0xff]
  %v86 = vld [vmem:[%s1 + $0x248] sm:$0xff]
  %v87 = vld [vmem:[%s1 + $0x250] sm:$0xff]
  %v88 = vld [vmem:[%s1 + $0x258] sm:$0xff]
  %v89 = vld [vmem:[%s1 + $0x260] sm:$0xff]
  %v90 = vld [vmem:[%s1 + $0x268] sm:$0xff]
  %v91 = vld [vmem:[%s1 + $0x270] sm:$0xff]
  %v92 = vld [vmem:[%s1 + $0x278] sm:$0xff]
  %v93 = vld [vmem:[%s1 + $0x280] sm:$0xff]
  %v94 = vld [vmem:[%s1 + $0x288] sm:$0xff]
  %v95 = vld [vmem:[%s1 + $0x290] sm:$0xff]
  %v96 = vld [vmem:[%s1 + $0x298] sm:$0xff]
  %v97 = vld [vmem:[%s1 + $0x2a0] sm:$0xff]
  %v98 = vld [vmem:[%s1 + $0x2a8] sm:$0xff]
  %v99 = vld [vmem:[%s1 + $0x2b0] sm:$0xff]
  %v100 = vld [vmem:[%s1 + $0x2b8] sm:$0xff]
  %v101 = vld [vmem:[%s1 + $0x2c0] sm:$0xff]
  %v102 = vld [vmem:[%s1 + $0x2c8] sm:$0xff]
  %v103 = vld [vmem:[%s1 + $0x2d0] sm:$0xff]
  %v104 = vld [vmem:[%s1 + $0x2d8] sm:$0xff]
  %v105 = vld [vmem:[%s1 + $0x2e0] sm:$0xff]
  %v106 = vld [vmem:[%s1 + $0x2e8] sm:$0xff]
  %v107 = vld [vmem:[%s1 + $0x2f0] sm:$0xff]
  %v108 = vld [vmem:[%s1 + $0x2f8] sm:$0xff]
  %v109 = vld [vmem:[%s1 + $0x300] sm:$0xff]
  %v110 = vld [vmem:[%s1 + $0x308] sm:$0xff]
  %v111 = vld [vmem:[%s1 + $0x310] sm:$0xff]
  %v112 = vld [vmem:[%s1 + $0x318] sm:$0xff]
  %v113 = vld [vmem:[%s1 + $0x320] sm:$0xff]
  %v114 = vld [vmem:[%s1 + $0x328] sm:$0xff]
  %v115 = vld [vmem:[%s1 + $0x330] sm:$0xff]
  %v116 = vld [vmem:[%s1 + $0x338] sm:$0xff]
  %v117 = vld [vmem:[%s1 + $0x340] sm:$0xff]
  %v118 = vld [vmem:[%s1 + $0x348] sm:$0xff]
  %v119 = vld [vmem:[%s1 + $0x350] sm:$0xff]
  %v120 = vld [vmem:[%s1 + $0x358] sm:$0xff]
  %v121 = vld [vmem:[%s1 + $0x360] sm:$0xff]
  %v122 = vld [vmem:[%s1 + $0x368] sm:$0xff]
  %v123 = vld [vmem:[%s1 + $0x370] sm:$0xff]
  %v124 = vld [vmem:[%s1 + $0x378] sm:$0xff]
  %v125 = vld [vmem:[%s1 + $0x380] sm:$0xff]
  %v126 = vld [vmem:[%s1 + $0x388] sm:$0xff]
  %v127 = vld [vmem:[%s1 + $0x390] sm:$0xff]
  %v128 = vld [vmem:[%s1 + $0x398] sm:$0xff]
  %v129 = vld [vmem:[%s1 + $0x3a0] sm:$0xff]
  %v130 = vld [vmem:[%s1 + $0x3a8] sm:$0xff]
  %v131 = vld [vmem:[%s1 + $0x3b0] sm:$0xff]
  %v132 = vld [vmem:[%s1 + $0x3b8] sm:$0xff]
  %v133 = vld [vmem:[%s1 + $0x3c0] sm:$0xff]
  %v134 = vld [vmem:[%s1 + $0x3c8] sm:$0xff]
  %v135 = vld [vmem:[%s1 + $0x3d0] sm:$0xff]
  %v136 = vld [vmem:[%s1 + $0x3d8] sm:$0xff]
  %v137 = vld [vmem:[%s1 + $0x3e0] sm:$0xff]
  %v138 = vld [vmem:[%s1 + $0x3e8] sm:$0xff]
  %v139 = vld [vmem:[%s1 + $0x3f0] sm:$0xff]
  %v140 = vld [vmem:[%s1 + $0x3f8] sm:$0xff]
  %v141 = vld [vmem:[%s1 + $0x400] sm:$0xff]
  %v142 = vld [vmem:[%s1 + $0x408] sm:$0xff]
  %v143 = vld [vmem:[%s1 + $0x410] sm:$0xff]
  %v144 = vld [vmem:[%s1 + $0x418] sm:$0xff]
  %v145 = vld [vmem:[%s1 + $0x420] sm:$0xff]
  %v146 = vld [vmem:[%s1 + $0x428] sm:$0xff]
  %v147 = vld [vmem:[%s1 + $0x430] sm:$0xff]
  %v148 = vld [vmem:[%s1 + $0x438] sm:$0xff]
  %v149 = vld [vmem:[%s1 + $0x440] sm:$0xff]
  %v150 = vld [vmem:[%s1 + $0x448] sm:$0xff]
  %v151 = vld [vmem:[%s1 + $0x450] sm:$0xff]
  %v152 = vld [vmem:[%s1 + $0x458] sm:$0xff]
  %v153 = vld [vmem:[%s1 + $0x460] sm:$0xff]
  %v154 = vld [vmem:[%s1 + $0x468] sm:$0xff]
  %v155 = vld [vmem:[%s1 + $0x470] sm:$0xff]
  %v156 = vld [vmem:[%s1 + $0x478] sm:$0xff]
  %v157 = vld [vmem:[%s1 + $0x480] sm:$0xff]
  %v158 = vld [vmem:[%s1 + $0x488] sm:$0xff]
  %v159 = vld [vmem:[%s1 + $0x490] sm:$0xff]
  %v160 = vld [vmem:[%s1 + $0x498] sm:$0xff]
  %v161 = vld [vmem:[%s1 + $0x4a0] sm:$0xff]
  %v162 = vld [vmem:[%s1 + $0x4a8] sm:$0xff]
  %v163 = vld [vmem:[%s1 + $0x4b0] sm:$0xff]
  %v164 = vld [vmem:[%s1 + $0x4b8] sm:$0xff]
  %v165 = vld [vmem:[%s1 + $0x4c0] sm:$0xff]
  %v166 = vld [vmem:[%s1 + $0x4c8] sm:$0xff]
  %v167 = vld [vmem:[%s1 + $0x4d0] sm:$0xff]
  %v168 = vld [vmem:[%s1 + $0x4d8] sm:$0xff]
  %v169 = vld [vmem:[%s1 + $0x4e0] sm:$0xff]
  %v170 = vld [vmem:[%s1 + $0x4e8] sm:$0xff]
  %v171 = vld [vmem:[%s1 + $0x4f0] sm:$0xff]
  %v172 = vld [vmem:[%s1 + $0x4f8] sm:$0xff]
  %v173 = vld [vmem:[%s1 + $0x500] sm:$0xff]
  %v174 = vld [vmem:[%s1 + $0x508] sm:$0xff]
  %v175 = vld [vmem:[%s1 + $0x510] sm:$0xff]
  %v176 = vld [vmem:[%s1 + $0x518] sm:$0xff]
  %v177 = vld [vmem:[%s1 + $0x520] sm:$0xff]
  %v178 = vld [vmem:[%s1 + $0x528] sm:$0xff]
  %v179 = vld [vmem:[%s1 + $0x530] sm:$0xff]
  %v180 = vld [vmem:[%s1 + $0x538] sm:$0xff]
  %v181 = vld [vmem:[%s1 + $0x540] sm:$0xff]
  %v182 = vld [vmem:[%s1 + $0x548] sm:$0xff]
  %v183 = vld [vmem:[%s1 + $0x550] sm:$0xff]
  %v184 = vld [vmem:[%s1 + $0x558] sm:$0xff]
  %v185 = vld [vmem:[%s1 + $0x560] sm:$0xff]
  %v186 = vld [vmem:[%s1 + $0x568] sm:$0xff]
  %v187 = vld [vmem:[%s1 + $0x570] sm:$0xff]
  %v188 = vld [vmem:[%s1 + $0x578] sm:$0xff]
  %v189 = vld [vmem:[%s1 + $0x580] sm:$0xff]
  %v190 = vld [vmem:[%s1 + $0x588] sm:$0xff]
  %v191 = vld [vmem:[%s1 + $0x590] sm:$0xff]
  %v192 = vld [vmem:[%s1 + $0x598] sm:$0xff]
  %v193 = vld [vmem:[%s1 + $0x5a0] sm:$0xff]
  %v194 = vld [vmem:[%s1 + $0x5a8] sm:$0xff]
  %v195 = vld [vmem:[%s1 + $0x5b0] sm:$0xff]
  %v196 = vld [vmem:[%s1 + $0x5b8] sm:$0xff]
  %v197 = vld [vmem:[%s1 + $0x5c0] sm:$0xff]
  %v198 = vld [vmem:[%s1 + $0x5c8] sm:$0xff]
  %v199 = vld [vmem:[%s1 + $0x5d0] sm:$0xff]
  %v200 = vld [vmem:[%s1 + $0x5d8] sm:$0xff]
  %v201 = vld [vmem:[%s1 + $0x5e0] sm:$0xff]
  %v202 = vld [vmem:[%s1 + $0x5e8] sm:$0xff]
  %v203 = vld [vmem:[%s1 + $0x5f0] sm:$0xff]
  %v204 = vld [vmem:[%s1 + $0x5f8] sm:$0xff]
  %v205 = vld [vmem:[%s1 + $0x600] sm:$0xff]
  %v206 = vld [vmem:[%s1 + $0x608] sm:$0xff]
  %v207 = vld [vmem:[%s1 + $0x610] sm:$0xff]
  %v208 = vld [vmem:[%s1 + $0x618] sm:$0xff]
  %v209 = vld [vmem:[%s1 + $0x620] sm:$0xff]
  %v210 = vld [vmem:[%s1 + $0x628] sm:$0xff]
  %v211 = vld [vmem:[%s1 + $0x630] sm:$0xff]
  %v212 = vld [vmem:[%s1 + $0x638] sm:$0xff]
  %v213 = vld [vmem:[%s1 + $0x640] sm:$0xff]
  %v214 = vld [vmem:[%s1 + $0x648] sm:$0xff]
  %v215 = vld [vmem:[%s1 + $0x650] sm:$0xff]
  %v216 = vld [vmem:[%s1 + $0x658] sm:$0xff]
  %v217 = vld [vmem:[%s1 + $0x660] sm:$0xff]
  %v218 = vld [vmem:[%s1 + $0x668] sm:$0xff]
  %v219 = vld [vmem:[%s1 + $0x670] sm:$0xff]
  %v220 = vld [vmem:[%s1 + $0x678] sm:$0xff]
  %v221 = vld [vmem:[%s1 + $0x680] sm:$0xff]
  %v222 = vld [vmem:[%s1 + $0x688] sm:$0xff]
  %v223 = vld [vmem:[%s1 + $0x690] sm:$0xff]
  %v224 = vld [vmem:[%s1 + $0x698] sm:$0xff]
  %v225 = vld [vmem:[%s1 + $0x6a0] sm:$0xff]
  %v226 = vld [vmem:[%s1 + $0x6a8] sm:$0xff]
  %v227 = vld [vmem:[%s1 + $0x6b0] sm:$0xff]
  %v228 = vld [vmem:[%s1 + $0x6b8] sm:$0xff]
  %v229 = vld [vmem:[%s1 + $0x6c0] sm:$0xff]
  %v230 = vld [vmem:[%s1 + $0x6c8] sm:$0xff]
  %v231 = vld [vmem:[%s1 + $0x6d0] sm:$0xff]
  %v232 = vld [vmem:[%s1 + $0x6d8] sm:$0xff]
  %v233 = vld [vmem:[%s1 + $0x6e0] sm:$0xff]
  %v234 = vld [vmem:[%s1 + $0x6e8] sm:$0xff]
  %v235 = vld [vmem:[%s1 + $0x6f0] sm:$0xff]
  %v236 = vld [vmem:[%s1 + $0x6f8] sm:$0xff]
  %v237 = vld [vmem:[%s1 + $0x700] sm:$0xff]
  %v238 = vld [vmem:[%s1 + $0x708] sm:$0xff]
  %v239 = vld [vmem:[%s1 + $0x710] sm:$0xff]
  %v240 = vld [vmem:[%s1 + $0x718] sm:$0xff]
  %v241 = vld [vmem:[%s1 + $0x720] sm:$0xff]
  %v242 = vld [vmem:[%s1 + $0x728] sm:$0xff]
  %v243 = vld [vmem:[%s1 + $0x730] sm:$0xff]
  %v244 = vld [vmem:[%s1 + $0x738] sm:$0xff]
  %v245 = vld [vmem:[%s1 + $0x740] sm:$0xff]
  %v246 = vld [vmem:[%s1 + $0x748] sm:$0xff]
  %v247 = vld [vmem:[%s1 + $0x750] sm:$0xff]
  %v248 = vld [vmem:[%s1 + $0x758] sm:$0xff]
  %v249 = vld [vmem:[%s1 + $0x760] sm:$0xff]
  %v250 = vld [vmem:[%s1 + $0x768] sm:$0xff]
  %v251 = vld [vmem:[%s1 + $0x770] sm:$0xff]
  %v252 = vld [vmem:[%s1 + $0x778] sm:$0xff]
  %v253 = vld [vmem:[%s1 + $0x780] sm:$0xff]
  %v254 = vld [vmem:[%s1 + $0x788] sm:$0xff]
  %v255 = vld [vmem:[%s1 + $0x790] sm:$0xff]
  %v256 = vld [vmem:[%s1 + $0x798] sm:$0xff]
  %v257 = vld [vmem:[%s1 + $0x7a0] sm:$0xff]
  %v258 = vld [vmem:[%s1 + $0x7a8] sm:$0xff]
  %v259 = vld [vmem:[%s1 + $0x7b0] sm:$0xff]
  %v260 = vld [vmem:[%s1 + $0x7b8] sm:$0xff]
  %v261 = vld [vmem:[%s1 + $0x7c0] sm:$0xff]
  %v262 = vld [vmem:[%s1 + $0x7c8] sm:$0xff]
  %v263 = vld [vmem:[%s1 + $0x7d0] sm:$0xff]
  %v264 = vld [vmem:[%s1 + $0x7d8] sm:$0xff]
  %v265 = vld [vmem:[%s1 + $0x7e0] sm:$0xff]
  %v266 = vld [vmem:[%s1 + $0x7e8] sm:$0xff]
  %v267 = vld [vmem:[%s1 + $0x7f0] sm:$0xff]
  %v268 = vld [vmem:[%s1 + $0x7f8] sm:$0xff]
  loop: start=0, step=1, limit=2
  $region10: #{classifier_forward.1} parent=0 // loop_pre_header
    _
  $region11: #{classifier_forward.1} parent=0 // loop_header
    %s270 = sphi 0, %s274
    %p271 = scmp.ge.s32.totalorder %s270, 2
  $region12: #{classifier_forward.1} parent=0 // loop_header_branch
    %273 = sbr.rel (%p271) target = $region16
  $region13: #{classifier_forward.1} parent=0 // loop_body
    %s275 = smul.u32 %s270, 2048
    %s276 = scalar_lea.vmem %s0, %s275
    %v277 = vld [vmem:[%s276] sm:$0xff]
    %v278 = vld [vmem:[%s276 + $0x8] sm:$0xff]
    %v279 = vld [vmem:[%s276 + $0x10] sm:$0xff]
    %v280 = vld [vmem:[%s276 + $0x18] sm:$0xff]
    %v281 = vld [vmem:[%s276 + $0x20] sm:$0xff]
    %v282 = vld [vmem:[%s276 + $0x28] sm:$0xff]
    %v283 = vld [vmem:[%s276 + $0x30] sm:$0xff]
    %v284 = vld [vmem:[%s276 + $0x38] sm:$0xff]
    %v285 = vld [vmem:[%s276 + $0x40] sm:$0xff]
    %v286 = vld [vmem:[%s276 + $0x48] sm:$0xff]
    %v287 = vld [vmem:[%s276 + $0x50] sm:$0xff]
    %v288 = vld [vmem:[%s276 + $0x58] sm:$0xff]
    %v289 = vld [vmem:[%s276 + $0x60] sm:$0xff]
    %v290 = vld [vmem:[%s276 + $0x68] sm:$0xff]
    %v291 = vld [vmem:[%s276 + $0x70] sm:$0xff]
    %v292 = vld [vmem:[%s276 + $0x78] sm:$0xff]
    %v293 = vld [vmem:[%s276 + $0x80] sm:$0xff]
    %v294 = vld [vmem:[%s276 + $0x88] sm:$0xff]
    %v295 = vld [vmem:[%s276 + $0x90] sm:$0xff]
    %v296 = vld [vmem:[%s276 + $0x98] sm:$0xff]
    %v297 = vld [vmem:[%s276 + $0xa0] sm:$0xff]
    %v298 = vld [vmem:[%s276 + $0xa8] sm:$0xff]
    %v299 = vld [vmem:[%s276 + $0xb0] sm:$0xff]
    %v300 = vld [vmem:[%s276 + $0xb8] sm:$0xff]
    %v301 = vld [vmem:[%s276 + $0xc0] sm:$0xff]
    %v302 = vld [vmem:[%s276 + $0xc8] sm:$0xff]
    %v303 = vld [vmem:[%s276 + $0xd0] sm:$0xff]
    %v304 = vld [vmem:[%s276 + $0xd8] sm:$0xff]
    %v305 = vld [vmem:[%s276 + $0xe0] sm:$0xff]
    %v306 = vld [vmem:[%s276 + $0xe8] sm:$0xff]
    %v307 = vld [vmem:[%s276 + $0xf0] sm:$0xff]
    %v308 = vld [vmem:[%s276 + $0xf8] sm:$0xff]
    %v309 = vld [vmem:[%s276 + $0x100] sm:$0xff]
    %v310 = vld [vmem:[%s276 + $0x108] sm:$0xff]
    %v311 = vld [vmem:[%s276 + $0x110] sm:$0xff]
    %v312 = vld [vmem:[%s276 + $0x118] sm:$0xff]
    %v313 = vld [vmem:[%s276 + $0x120] sm:$0xff]
    %v314 = vld [vmem:[%s276 + $0x128] sm:$0xff]
    %v315 = vld [vmem:[%s276 + $0x130] sm:$0xff]
    %v316 = vld [vmem:[%s276 + $0x138] sm:$0xff]
    %v317 = vld [vmem:[%s276 + $0x140] sm:$0xff]
    %v318 = vld [vmem:[%s276 + $0x148] sm:$0xff]
    %v319 = vld [vmem:[%s276 + $0x150] sm:$0xff]
    %v320 = vld [vmem:[%s276 + $0x158] sm:$0xff]
    %v321 = vld [vmem:[%s276 + $0x160] sm:$0xff]
    %v322 = vld [vmem:[%s276 + $0x168] sm:$0xff]
    %v323 = vld [vmem:[%s276 + $0x170] sm:$0xff]
    %v324 = vld [vmem:[%s276 + $0x178] sm:$0xff]
    %v325 = vld [vmem:[%s276 + $0x180] sm:$0xff]
    %v326 = vld [vmem:[%s276 + $0x188] sm:$0xff]
    %v327 = vld [vmem:[%s276 + $0x190] sm:$0xff]
    %v328 = vld [vmem:[%s276 + $0x198] sm:$0xff]
    %v329 = vld [vmem:[%s276 + $0x1a0] sm:$0xff]
    %v330 = vld [vmem:[%s276 + $0x1a8] sm:$0xff]
    %v331 = vld [vmem:[%s276 + $0x1b0] sm:$0xff]
    %v332 = vld [vmem:[%s276 + $0x1b8] sm:$0xff]
    %v333 = vld [vmem:[%s276 + $0x1c0] sm:$0xff]
    %v334 = vld [vmem:[%s276 + $0x1c8] sm:$0xff]
    %v335 = vld [vmem:[%s276 + $0x1d0] sm:$0xff]
    %v336 = vld [vmem:[%s276 + $0x1d8] sm:$0xff]
    %v337 = vld [vmem:[%s276 + $0x1e0] sm:$0xff]
    %v338 = vld [vmem:[%s276 + $0x1e8] sm:$0xff]
    %v339 = vld [vmem:[%s276 + $0x1f0] sm:$0xff]
    %v340 = vld [vmem:[%s276 + $0x1f8] sm:$0xff]
    %v341 = vld [vmem:[%s276 + $0x200] sm:$0xff]
    %v342 = vld [vmem:[%s276 + $0x208] sm:$0xff]
    %v343 = vld [vmem:[%s276 + $0x210] sm:$0xff]
    %v344 = vld [vmem:[%s276 + $0x218] sm:$0xff]
    %v345 = vld [vmem:[%s276 + $0x220] sm:$0xff]
    %v346 = vld [vmem:[%s276 + $0x228] sm:$0xff]
    %v347 = vld [vmem:[%s276 + $0x230] sm:$0xff]
    %v348 = vld [vmem:[%s276 + $0x238] sm:$0xff]
    %v349 = vld [vmem:[%s276 + $0x240] sm:$0xff]
    %v350 = vld [vmem:[%s276 + $0x248] sm:$0xff]
    %v351 = vld [vmem:[%s276 + $0x250] sm:$0xff]
    %v352 = vld [vmem:[%s276 + $0x258] sm:$0xff]
    %v353 = vld [vmem:[%s276 + $0x260] sm:$0xff]
    %v354 = vld [vmem:[%s276 + $0x268] sm:$0xff]
    %v355 = vld [vmem:[%s276 + $0x270] sm:$0xff]
    %v356 = vld [vmem:[%s276 + $0x278] sm:$0xff]
    %v357 = vld [vmem:[%s276 + $0x280] sm:$0xff]
    %v358 = vld [vmem:[%s276 + $0x288] sm:$0xff]
    %v359 = vld [vmem:[%s276 + $0x290] sm:$0xff]
    %v360 = vld [vmem:[%s276 + $0x298] sm:$0xff]
    %v361 = vld [vmem:[%s276 + $0x2a0] sm:$0xff]
    %v362 = vld [vmem:[%s276 + $0x2a8] sm:$0xff]
    %v363 = vld [vmem:[%s276 + $0x2b0] sm:$0xff]
    %v364 = vld [vmem:[%s276 + $0x2b8] sm:$0xff]
    %v365 = vld [vmem:[%s276 + $0x2c0] sm:$0xff]
    %v366 = vld [vmem:[%s276 + $0x2c8] sm:$0xff]
    %v367 = vld [vmem:[%s276 + $0x2d0] sm:$0xff]
    %v368 = vld [vmem:[%s276 + $0x2d8] sm:$0xff]
    %v369 = vld [vmem:[%s276 + $0x2e0] sm:$0xff]
    %v370 = vld [vmem:[%s276 + $0x2e8] sm:$0xff]
    %v371 = vld [vmem:[%s276 + $0x2f0] sm:$0xff]
    %v372 = vld [vmem:[%s276 + $0x2f8] sm:$0xff]
    %v373 = vld [vmem:[%s276 + $0x300] sm:$0xff]
    %v374 = vld [vmem:[%s276 + $0x308] sm:$0xff]
    %v375 = vld [vmem:[%s276 + $0x310] sm:$0xff]
    %v376 = vld [vmem:[%s276 + $0x318] sm:$0xff]
    %v377 = vld [vmem:[%s276 + $0x320] sm:$0xff]
    %v378 = vld [vmem:[%s276 + $0x328] sm:$0xff]
    %v379 = vld [vmem:[%s276 + $0x330] sm:$0xff]
    %v380 = vld [vmem:[%s276 + $0x338] sm:$0xff]
    %v381 = vld [vmem:[%s276 + $0x340] sm:$0xff]
    %v382 = vld [vmem:[%s276 + $0x348] sm:$0xff]
    %v383 = vld [vmem:[%s276 + $0x350] sm:$0xff]
    %v384 = vld [vmem:[%s276 + $0x358] sm:$0xff]
    %v385 = vld [vmem:[%s276 + $0x360] sm:$0xff]
    %v386 = vld [vmem:[%s276 + $0x368] sm:$0xff]
    %v387 = vld [vmem:[%s276 + $0x370] sm:$0xff]
    %v388 = vld [vmem:[%s276 + $0x378] sm:$0xff]
    %v389 = vld [vmem:[%s276 + $0x380] sm:$0xff]
    %v390 = vld [vmem:[%s276 + $0x388] sm:$0xff]
    %v391 = vld [vmem:[%s276 + $0x390] sm:$0xff]
    %v392 = vld [vmem:[%s276 + $0x398] sm:$0xff]
    %v393 = vld [vmem:[%s276 + $0x3a0] sm:$0xff]
    %v394 = vld [vmem:[%s276 + $0x3a8] sm:$0xff]
    %v395 = vld [vmem:[%s276 + $0x3b0] sm:$0xff]
    %v396 = vld [vmem:[%s276 + $0x3b8] sm:$0xff]
    %v397 = vld [vmem:[%s276 + $0x3c0] sm:$0xff]
    %v398 = vld [vmem:[%s276 + $0x3c8] sm:$0xff]
    %v399 = vld [vmem:[%s276 + $0x3d0] sm:$0xff]
    %v400 = vld [vmem:[%s276 + $0x3d8] sm:$0xff]
    %v401 = vld [vmem:[%s276 + $0x3e0] sm:$0xff]
    %v402 = vld [vmem:[%s276 + $0x3e8] sm:$0xff]
    %v403 = vld [vmem:[%s276 + $0x3f0] sm:$0xff]
    %v404 = vld [vmem:[%s276 + $0x3f8] sm:$0xff]
    %v405 = vld [vmem:[%s276 + $0x400] sm:$0xff]
    %v406 = vld [vmem:[%s276 + $0x408] sm:$0xff]
    %v407 = vld [vmem:[%s276 + $0x410] sm:$0xff]
    %v408 = vld [vmem:[%s276 + $0x418] sm:$0xff]
    %v409 = vld [vmem:[%s276 + $0x420] sm:$0xff]
    %v410 = vld [vmem:[%s276 + $0x428] sm:$0xff]
    %v411 = vld [vmem:[%s276 + $0x430] sm:$0xff]
    %v412 = vld [vmem:[%s276 + $0x438] sm:$0xff]
    %v413 = vld [vmem:[%s276 + $0x440] sm:$0xff]
    %v414 = vld [vmem:[%s276 + $0x448] sm:$0xff]
    %v415 = vld [vmem:[%s276 + $0x450] sm:$0xff]
    %v416 = vld [vmem:[%s276 + $0x458] sm:$0xff]
    %v417 = vld [vmem:[%s276 + $0x460] sm:$0xff]
    %v418 = vld [vmem:[%s276 + $0x468] sm:$0xff]
    %v419 = vld [vmem:[%s276 + $0x470] sm:$0xff]
    %v420 = vld [vmem:[%s276 + $0x478] sm:$0xff]
    %v421 = vld [vmem:[%s276 + $0x480] sm:$0xff]
    %v422 = vld [vmem:[%s276 + $0x488] sm:$0xff]
    %v423 = vld [vmem:[%s276 + $0x490] sm:$0xff]
    %v424 = vld [vmem:[%s276 + $0x498] sm:$0xff]
    %v425 = vld [vmem:[%s276 + $0x4a0] sm:$0xff]
    %v426 = vld [vmem:[%s276 + $0x4a8] sm:$0xff]
    %v427 = vld [vmem:[%s276 + $0x4b0] sm:$0xff]
    %v428 = vld [vmem:[%s276 + $0x4b8] sm:$0xff]
    %v429 = vld [vmem:[%s276 + $0x4c0] sm:$0xff]
    %v430 = vld [vmem:[%s276 + $0x4c8] sm:$0xff]
    %v431 = vld [vmem:[%s276 + $0x4d0] sm:$0xff]
    %v432 = vld [vmem:[%s276 + $0x4d8] sm:$0xff]
    %v433 = vld [vmem:[%s276 + $0x4e0] sm:$0xff]
    %v434 = vld [vmem:[%s276 + $0x4e8] sm:$0xff]
    %v435 = vld [vmem:[%s276 + $0x4f0] sm:$0xff]
    %v436 = vld [vmem:[%s276 + $0x4f8] sm:$0xff]
    %v437 = vld [vmem:[%s276 + $0x500] sm:$0xff]
    %v438 = vld [vmem:[%s276 + $0x508] sm:$0xff]
    %v439 = vld [vmem:[%s276 + $0x510] sm:$0xff]
    %v440 = vld [vmem:[%s276 + $0x518] sm:$0xff]
    %v441 = vld [vmem:[%s276 + $0x520] sm:$0xff]
    %v442 = vld [vmem:[%s276 + $0x528] sm:$0xff]
    %v443 = vld [vmem:[%s276 + $0x530] sm:$0xff]
    %v444 = vld [vmem:[%s276 + $0x538] sm:$0xff]
    %v445 = vld [vmem:[%s276 + $0x540] sm:$0xff]
    %v446 = vld [vmem:[%s276 + $0x548] sm:$0xff]
    %v447 = vld [vmem:[%s276 + $0x550] sm:$0xff]
    %v448 = vld [vmem:[%s276 + $0x558] sm:$0xff]
    %v449 = vld [vmem:[%s276 + $0x560] sm:$0xff]
    %v450 = vld [vmem:[%s276 + $0x568] sm:$0xff]
    %v451 = vld [vmem:[%s276 + $0x570] sm:$0xff]
    %v452 = vld [vmem:[%s276 + $0x578] sm:$0xff]
    %v453 = vld [vmem:[%s276 + $0x580] sm:$0xff]
    %v454 = vld [vmem:[%s276 + $0x588] sm:$0xff]
    %v455 = vld [vmem:[%s276 + $0x590] sm:$0xff]
    %v456 = vld [vmem:[%s276 + $0x598] sm:$0xff]
    %v457 = vld [vmem:[%s276 + $0x5a0] sm:$0xff]
    %v458 = vld [vmem:[%s276 + $0x5a8] sm:$0xff]
    %v459 = vld [vmem:[%s276 + $0x5b0] sm:$0xff]
    %v460 = vld [vmem:[%s276 + $0x5b8] sm:$0xff]
    %v461 = vld [vmem:[%s276 + $0x5c0] sm:$0xff]
    %v462 = vld [vmem:[%s276 + $0x5c8] sm:$0xff]
    %v463 = vld [vmem:[%s276 + $0x5d0] sm:$0xff]
    %v464 = vld [vmem:[%s276 + $0x5d8] sm:$0xff]
    %v465 = vld [vmem:[%s276 + $0x5e0] sm:$0xff]
    %v466 = vld [vmem:[%s276 + $0x5e8] sm:$0xff]
    %v467 = vld [vmem:[%s276 + $0x5f0] sm:$0xff]
    %v468 = vld [vmem:[%s276 + $0x5f8] sm:$0xff]
    %v469 = vld [vmem:[%s276 + $0x600] sm:$0xff]
    %v470 = vld [vmem:[%s276 + $0x608] sm:$0xff]
    %v471 = vld [vmem:[%s276 + $0x610] sm:$0xff]
    %v472 = vld [vmem:[%s276 + $0x618] sm:$0xff]
    %v473 = vld [vmem:[%s276 + $0x620] sm:$0xff]
    %v474 = vld [vmem:[%s276 + $0x628] sm:$0xff]
    %v475 = vld [vmem:[%s276 + $0x630] sm:$0xff]
    %v476 = vld [vmem:[%s276 + $0x638] sm:$0xff]
    %v477 = vld [vmem:[%s276 + $0x640] sm:$0xff]
    %v478 = vld [vmem:[%s276 + $0x648] sm:$0xff]
    %v479 = vld [vmem:[%s276 + $0x650] sm:$0xff]
    %v480 = vld [vmem:[%s276 + $0x658] sm:$0xff]
    %v481 = vld [vmem:[%s276 + $0x660] sm:$0xff]
    %v482 = vld [vmem:[%s276 + $0x668] sm:$0xff]
    %v483 = vld [vmem:[%s276 + $0x670] sm:$0xff]
    %v484 = vld [vmem:[%s276 + $0x678] sm:$0xff]
    %v485 = vld [vmem:[%s276 + $0x680] sm:$0xff]
    %v486 = vld [vmem:[%s276 + $0x688] sm:$0xff]
    %v487 = vld [vmem:[%s276 + $0x690] sm:$0xff]
    %v488 = vld [vmem:[%s276 + $0x698] sm:$0xff]
    %v489 = vld [vmem:[%s276 + $0x6a0] sm:$0xff]
    %v490 = vld [vmem:[%s276 + $0x6a8] sm:$0xff]
    %v491 = vld [vmem:[%s276 + $0x6b0] sm:$0xff]
    %v492 = vld [vmem:[%s276 + $0x6b8] sm:$0xff]
    %v493 = vld [vmem:[%s276 + $0x6c0] sm:$0xff]
    %v494 = vld [vmem:[%s276 + $0x6c8] sm:$0xff]
    %v495 = vld [vmem:[%s276 + $0x6d0] sm:$0xff]
    %v496 = vld [vmem:[%s276 + $0x6d8] sm:$0xff]
    %v497 = vld [vmem:[%s276 + $0x6e0] sm:$0xff]
    %v498 = vld [vmem:[%s276 + $0x6e8] sm:$0xff]
    %v499 = vld [vmem:[%s276 + $0x6f0] sm:$0xff]
    %v500 = vld [vmem:[%s276 + $0x6f8] sm:$0xff]
    %v501 = vld [vmem:[%s276 + $0x700] sm:$0xff]
    %v502 = vld [vmem:[%s276 + $0x708] sm:$0xff]
    %v503 = vld [vmem:[%s276 + $0x710] sm:$0xff]
    %v504 = vld [vmem:[%s276 + $0x718] sm:$0xff]
    %v505 = vld [vmem:[%s276 + $0x720] sm:$0xff]
    %v506 = vld [vmem:[%s276 + $0x728] sm:$0xff]
    %v507 = vld [vmem:[%s276 + $0x730] sm:$0xff]
    %v508 = vld [vmem:[%s276 + $0x738] sm:$0xff]
    %v509 = vld [vmem:[%s276 + $0x740] sm:$0xff]
    %v510 = vld [vmem:[%s276 + $0x748] sm:$0xff]
    %v511 = vld [vmem:[%s276 + $0x750] sm:$0xff]
    %v512 = vld [vmem:[%s276 + $0x758] sm:$0xff]
    %v513 = vld [vmem:[%s276 + $0x760] sm:$0xff]
    %v514 = vld [vmem:[%s276 + $0x768] sm:$0xff]
    %v515 = vld [vmem:[%s276 + $0x770] sm:$0xff]
    %v516 = vld [vmem:[%s276 + $0x778] sm:$0xff]
    %v517 = vld [vmem:[%s276 + $0x780] sm:$0xff]
    %v518 = vld [vmem:[%s276 + $0x788] sm:$0xff]
    %v519 = vld [vmem:[%s276 + $0x790] sm:$0xff]
    %v520 = vld [vmem:[%s276 + $0x798] sm:$0xff]
    %v521 = vld [vmem:[%s276 + $0x7a0] sm:$0xff]
    %v522 = vld [vmem:[%s276 + $0x7a8] sm:$0xff]
    %v523 = vld [vmem:[%s276 + $0x7b0] sm:$0xff]
    %v524 = vld [vmem:[%s276 + $0x7b8] sm:$0xff]
    %v525 = vld [vmem:[%s276 + $0x7c0] sm:$0xff]
    %v526 = vld [vmem:[%s276 + $0x7c8] sm:$0xff]
    %v527 = vld [vmem:[%s276 + $0x7d0] sm:$0xff]
    %v528 = vld [vmem:[%s276 + $0x7d8] sm:$0xff]
    %v529 = vld [vmem:[%s276 + $0x7e0] sm:$0xff]
    %v530 = vld [vmem:[%s276 + $0x7e8] sm:$0xff]
    %v531 = vld [vmem:[%s276 + $0x7f0] sm:$0xff]
    %v532 = vld [vmem:[%s276 + $0x7f8] sm:$0xff]
    %533 = vmatpush.msra.mxu0 %v292
    %534 = vmatpush.msra.mxu0 %v291
    %535 = vmatpush.msra.mxu0 %v290
    %536 = vmatpush.msra.mxu0 %v289
    %537 = vmatpush.msra.mxu0 %v288
    %538 = vmatpush.msra.mxu0 %v287
    %539 = vmatpush.msra.mxu0 %v286
    %540 = vmatpush.msra.mxu0 %v285
    %541 = vmatpush.msra.mxu0 %v284
    %542 = vmatpush.msra.mxu0 %v283
    %543 = vmatpush.msra.mxu0 %v282
    %544 = vmatpush.msra.mxu0 %v281
    %545 = vmatpush.msra.mxu0 %v280
    %546 = vmatpush.msra.mxu0 %v279
    %547 = vmatpush.msra.mxu0 %v278
    %548 = vmatpush.msra.mxu0 %v277
    %549 = vmatmul.f32.gmra.mxu0 %v13
    %v550 = vpop.f32.mrf.mxu0
    %v551 = vadd.f32 0.0, %v550
    %552 = vmatmul.f32.gmra.mxu0 %v29
    %v553 = vpop.f32.mrf.mxu0
    %v554 = vadd.f32 0.0, %v553
    %555 = vmatmul.f32.gmra.mxu0 %v45
    %v556 = vpop.f32.mrf.mxu0
    %v557 = vadd.f32 0.0, %v556
    %558 = vmatmul.f32.gmra.mxu0 %v61
    %v559 = vpop.f32.mrf.mxu0
    %v560 = vadd.f32 0.0, %v559
    %561 = vmatmul.f32.gmra.mxu0 %v77
    %v562 = vpop.f32.mrf.mxu0
    %v563 = vadd.f32 0.0, %v562
    %564 = vmatmul.f32.gmra.mxu0 %v93
    %v565 = vpop.f32.mrf.mxu0
    %v566 = vadd.f32 0.0, %v565
    %567 = vmatmul.f32.gmra.mxu0 %v109
    %v568 = vpop.f32.mrf.mxu0
    %v569 = vadd.f32 0.0, %v568
    %570 = vmatmul.f32.gmra.mxu0 %v125
    %v571 = vpop.f32.mrf.mxu0
    %v572 = vadd.f32 0.0, %v571
    %573 = vmatmul.f32.gmra.mxu0 %v141
    %v574 = vpop.f32.mrf.mxu0
    %v575 = vadd.f32 0.0, %v574
    %576 = vmatmul.f32.gmra.mxu0 %v157
    %v577 = vpop.f32.mrf.mxu0
    %v578 = vadd.f32 0.0, %v577
    %579 = vmatmul.f32.gmra.mxu0 %v173
    %v580 = vpop.f32.mrf.mxu0
    %v581 = vadd.f32 0.0, %v580
    %582 = vmatmul.f32.gmra.mxu0 %v189
    %v583 = vpop.f32.mrf.mxu0
    %v584 = vadd.f32 0.0, %v583
    %585 = vmatmul.f32.gmra.mxu0 %v205
    %v586 = vpop.f32.mrf.mxu0
    %v587 = vadd.f32 0.0, %v586
    %588 = vmatmul.f32.gmra.mxu0 %v221
    %v589 = vpop.f32.mrf.mxu0
    %v590 = vadd.f32 0.0, %v589
    %591 = vmatmul.f32.gmra.mxu0 %v237
    %v592 = vpop.f32.mrf.mxu0
    %v593 = vadd.f32 0.0, %v592
    %594 = vmatmul.f32.gmra.mxu0 %v253
    %v595 = vpop.f32.mrf.mxu0
    %v596 = vadd.f32 0.0, %v595
    %597 = vdwg.mxu0
    %598 = vmatpush.msra.mxu0 %v308
    %599 = vmatpush.msra.mxu0 %v307
    %600 = vmatpush.msra.mxu0 %v306
    %601 = vmatpush.msra.mxu0 %v305
    %602 = vmatpush.msra.mxu0 %v304
    %603 = vmatpush.msra.mxu0 %v303
    %604 = vmatpush.msra.mxu0 %v302
    %605 = vmatpush.msra.mxu0 %v301
    %606 = vmatpush.msra.mxu0 %v300
    %607 = vmatpush.msra.mxu0 %v299
    %608 = vmatpush.msra.mxu0 %v298
    %609 = vmatpush.msra.mxu0 %v297
    %610 = vmatpush.msra.mxu0 %v296
    %611 = vmatpush.msra.mxu0 %v295
    %612 = vmatpush.msra.mxu0 %v294
    %613 = vmatpush.msra.mxu0 %v293
    %614 = vmatmul.f32.gmra.mxu0 %v14
    %v615 = vpop.f32.mrf.mxu0
    %v616 = vadd.f32 %v551, %v615
    %617 = vmatmul.f32.gmra.mxu0 %v30
    %v618 = vpop.f32.mrf.mxu0
    %v619 = vadd.f32 %v554, %v618
    %620 = vmatmul.f32.gmra.mxu0 %v46
    %v621 = vpop.f32.mrf.mxu0
    %v622 = vadd.f32 %v557, %v621
    %623 = vmatmul.f32.gmra.mxu0 %v62
    %v624 = vpop.f32.mrf.mxu0
    %v625 = vadd.f32 %v560, %v624
    %626 = vmatmul.f32.gmra.mxu0 %v78
    %v627 = vpop.f32.mrf.mxu0
    %v628 = vadd.f32 %v563, %v627
    %629 = vmatmul.f32.gmra.mxu0 %v94
    %v630 = vpop.f32.mrf.mxu0
    %v631 = vadd.f32 %v566, %v630
    %632 = vmatmul.f32.gmra.mxu0 %v110
    %v633 = vpop.f32.mrf.mxu0
    %v634 = vadd.f32 %v569, %v633
    %635 = vmatmul.f32.gmra.mxu0 %v126
    %v636 = vpop.f32.mrf.mxu0
    %v637 = vadd.f32 %v572, %v636
    %638 = vmatmul.f32.gmra.mxu0 %v142
    %v639 = vpop.f32.mrf.mxu0
    %v640 = vadd.f32 %v575, %v639
    %641 = vmatmul.f32.gmra.mxu0 %v158
    %v642 = vpop.f32.mrf.mxu0
    %v643 = vadd.f32 %v578, %v642
    %644 = vmatmul.f32.gmra.mxu0 %v174
    %v645 = vpop.f32.mrf.mxu0
    %v646 = vadd.f32 %v581, %v645
    %647 = vmatmul.f32.gmra.mxu0 %v190
    %v648 = vpop.f32.mrf.mxu0
    %v649 = vadd.f32 %v584, %v648
    %650 = vmatmul.f32.gmra.mxu0 %v206
    %v651 = vpop.f32.mrf.mxu0
    %v652 = vadd.f32 %v587, %v651
    %653 = vmatmul.f32.gmra.mxu0 %v222
    %v654 = vpop.f32.mrf.mxu0
    %v655 = vadd.f32 %v590, %v654
    %656 = vmatmul.f32.gmra.mxu0 %v238
    %v657 = vpop.f32.mrf.mxu0
    %v658 = vadd.f32 %v593, %v657
    %659 = vmatmul.f32.gmra.mxu0 %v254
    %v660 = vpop.f32.mrf.mxu0
    %v661 = vadd.f32 %v596, %v660
    %662 = vdwg.mxu0
    %663 = vmatpush.msra.mxu0 %v324
    %664 = vmatpush.msra.mxu0 %v323
    %665 = vmatpush.msra.mxu0 %v322
    %666 = vmatpush.msra.mxu0 %v321
    %667 = vmatpush.msra.mxu0 %v320
    %668 = vmatpush.msra.mxu0 %v319
    %669 = vmatpush.msra.mxu0 %v318
    %670 = vmatpush.msra.mxu0 %v317
    %671 = vmatpush.msra.mxu0 %v316
    %672 = vmatpush.msra.mxu0 %v315
    %673 = vmatpush.msra.mxu0 %v314
    %674 = vmatpush.msra.mxu0 %v313
    %675 = vmatpush.msra.mxu0 %v312
    %676 = vmatpush.msra.mxu0 %v311
    %677 = vmatpush.msra.mxu0 %v310
    %678 = vmatpush.msra.mxu0 %v309
    %679 = vmatmul.f32.gmra.mxu0 %v15
    %v680 = vpop.f32.mrf.mxu0
    %v681 = vadd.f32 %v616, %v680
    %682 = vmatmul.f32.gmra.mxu0 %v31
    %v683 = vpop.f32.mrf.mxu0
    %v684 = vadd.f32 %v619, %v683
    %685 = vmatmul.f32.gmra.mxu0 %v47
    %v686 = vpop.f32.mrf.mxu0
    %v687 = vadd.f32 %v622, %v686
    %688 = vmatmul.f32.gmra.mxu0 %v63
    %v689 = vpop.f32.mrf.mxu0
    %v690 = vadd.f32 %v625, %v689
    %691 = vmatmul.f32.gmra.mxu0 %v79
    %v692 = vpop.f32.mrf.mxu0
    %v693 = vadd.f32 %v628, %v692
    %694 = vmatmul.f32.gmra.mxu0 %v95
    %v695 = vpop.f32.mrf.mxu0
    %v696 = vadd.f32 %v631, %v695
    %697 = vmatmul.f32.gmra.mxu0 %v111
    %v698 = vpop.f32.mrf.mxu0
    %v699 = vadd.f32 %v634, %v698
    %700 = vmatmul.f32.gmra.mxu0 %v127
    %v701 = vpop.f32.mrf.mxu0
    %v702 = vadd.f32 %v637, %v701
    %703 = vmatmul.f32.gmra.mxu0 %v143
    %v704 = vpop.f32.mrf.mxu0
    %v705 = vadd.f32 %v640, %v704
    %706 = vmatmul.f32.gmra.mxu0 %v159
    %v707 = vpop.f32.mrf.mxu0
    %v708 = vadd.f32 %v643, %v707
    %709 = vmatmul.f32.gmra.mxu0 %v175
    %v710 = vpop.f32.mrf.mxu0
    %v711 = vadd.f32 %v646, %v710
    %712 = vmatmul.f32.gmra.mxu0 %v191
    %v713 = vpop.f32.mrf.mxu0
    %v714 = vadd.f32 %v649, %v713
    %715 = vmatmul.f32.gmra.mxu0 %v207
    %v716 = vpop.f32.mrf.mxu0
    %v717 = vadd.f32 %v652, %v716
    %718 = vmatmul.f32.gmra.mxu0 %v223
    %v719 = vpop.f32.mrf.mxu0
    %v720 = vadd.f32 %v655, %v719
    %721 = vmatmul.f32.gmra.mxu0 %v239
    %v722 = vpop.f32.mrf.mxu0
    %v723 = vadd.f32 %v658, %v722
    %724 = vmatmul.f32.gmra.mxu0 %v255
    %v725 = vpop.f32.mrf.mxu0
    %v726 = vadd.f32 %v661, %v725
    %727 = vdwg.mxu0
    %728 = vmatpush.msra.mxu0 %v340
    %729 = vmatpush.msra.mxu0 %v339
    %730 = vmatpush.msra.mxu0 %v338
    %731 = vmatpush.msra.mxu0 %v337
    %732 = vmatpush.msra.mxu0 %v336
    %733 = vmatpush.msra.mxu0 %v335
    %734 = vmatpush.msra.mxu0 %v334
    %735 = vmatpush.msra.mxu0 %v333
    %736 = vmatpush.msra.mxu0 %v332
    %737 = vmatpush.msra.mxu0 %v331
    %738 = vmatpush.msra.mxu0 %v330
    %739 = vmatpush.msra.mxu0 %v329
    %740 = vmatpush.msra.mxu0 %v328
    %741 = vmatpush.msra.mxu0 %v327
    %742 = vmatpush.msra.mxu0 %v326
    %743 = vmatpush.msra.mxu0 %v325
    %744 = vmatmul.f32.gmra.mxu0 %v16
    %v745 = vpop.f32.mrf.mxu0
    %v746 = vadd.f32 %v681, %v745
    %747 = vmatmul.f32.gmra.mxu0 %v32
    %v748 = vpop.f32.mrf.mxu0
    %v749 = vadd.f32 %v684, %v748
    %750 = vmatmul.f32.gmra.mxu0 %v48
    %v751 = vpop.f32.mrf.mxu0
    %v752 = vadd.f32 %v687, %v751
    %753 = vmatmul.f32.gmra.mxu0 %v64
    %v754 = vpop.f32.mrf.mxu0
    %v755 = vadd.f32 %v690, %v754
    %756 = vmatmul.f32.gmra.mxu0 %v80
    %v757 = vpop.f32.mrf.mxu0
    %v758 = vadd.f32 %v693, %v757
    %759 = vmatmul.f32.gmra.mxu0 %v96
    %v760 = vpop.f32.mrf.mxu0
    %v761 = vadd.f32 %v696, %v760
    %762 = vmatmul.f32.gmra.mxu0 %v112
    %v763 = vpop.f32.mrf.mxu0
    %v764 = vadd.f32 %v699, %v763
    %765 = vmatmul.f32.gmra.mxu0 %v128
    %v766 = vpop.f32.mrf.mxu0
    %v767 = vadd.f32 %v702, %v766
    %768 = vmatmul.f32.gmra.mxu0 %v144
    %v769 = vpop.f32.mrf.mxu0
    %v770 = vadd.f32 %v705, %v769
    %771 = vmatmul.f32.gmra.mxu0 %v160
    %v772 = vpop.f32.mrf.mxu0
    %v773 = vadd.f32 %v708, %v772
    %774 = vmatmul.f32.gmra.mxu0 %v176
    %v775 = vpop.f32.mrf.mxu0
    %v776 = vadd.f32 %v711, %v775
    %777 = vmatmul.f32.gmra.mxu0 %v192
    %v778 = vpop.f32.mrf.mxu0
    %v779 = vadd.f32 %v714, %v778
    %780 = vmatmul.f32.gmra.mxu0 %v208
    %v781 = vpop.f32.mrf.mxu0
    %v782 = vadd.f32 %v717, %v781
    %783 = vmatmul.f32.gmra.mxu0 %v224
    %v784 = vpop.f32.mrf.mxu0
    %v785 = vadd.f32 %v720, %v784
    %786 = vmatmul.f32.gmra.mxu0 %v240
    %v787 = vpop.f32.mrf.mxu0
    %v788 = vadd.f32 %v723, %v787
    %789 = vmatmul.f32.gmra.mxu0 %v256
    %v790 = vpop.f32.mrf.mxu0
    %v791 = vadd.f32 %v726, %v790
    %792 = vdwg.mxu0
    %793 = vmatpush.msra.mxu0 %v356
    %794 = vmatpush.msra.mxu0 %v355
    %795 = vmatpush.msra.mxu0 %v354
    %796 = vmatpush.msra.mxu0 %v353
    %797 = vmatpush.msra.mxu0 %v352
    %798 = vmatpush.msra.mxu0 %v351
    %799 = vmatpush.msra.mxu0 %v350
    %800 = vmatpush.msra.mxu0 %v349
    %801 = vmatpush.msra.mxu0 %v348
    %802 = vmatpush.msra.mxu0 %v347
    %803 = vmatpush.msra.mxu0 %v346
    %804 = vmatpush.msra.mxu0 %v345
    %805 = vmatpush.msra.mxu0 %v344
    %806 = vmatpush.msra.mxu0 %v343
    %807 = vmatpush.msra.mxu0 %v342
    %808 = vmatpush.msra.mxu0 %v341
    %809 = vmatmul.f32.gmra.mxu0 %v17
    %v810 = vpop.f32.mrf.mxu0
    %v811 = vadd.f32 %v746, %v810
    %812 = vmatmul.f32.gmra.mxu0 %v33
    %v813 = vpop.f32.mrf.mxu0
    %v814 = vadd.f32 %v749, %v813
    %815 = vmatmul.f32.gmra.mxu0 %v49
    %v816 = vpop.f32.mrf.mxu0
    %v817 = vadd.f32 %v752, %v816
    %818 = vmatmul.f32.gmra.mxu0 %v65
    %v819 = vpop.f32.mrf.mxu0
    %v820 = vadd.f32 %v755, %v819
    %821 = vmatmul.f32.gmra.mxu0 %v81
    %v822 = vpop.f32.mrf.mxu0
    %v823 = vadd.f32 %v758, %v822
    %824 = vmatmul.f32.gmra.mxu0 %v97
    %v825 = vpop.f32.mrf.mxu0
    %v826 = vadd.f32 %v761, %v825
    %827 = vmatmul.f32.gmra.mxu0 %v113
    %v828 = vpop.f32.mrf.mxu0
    %v829 = vadd.f32 %v764, %v828
    %830 = vmatmul.f32.gmra.mxu0 %v129
    %v831 = vpop.f32.mrf.mxu0
    %v832 = vadd.f32 %v767, %v831
    %833 = vmatmul.f32.gmra.mxu0 %v145
    %v834 = vpop.f32.mrf.mxu0
    %v835 = vadd.f32 %v770, %v834
    %836 = vmatmul.f32.gmra.mxu0 %v161
    %v837 = vpop.f32.mrf.mxu0
    %v838 = vadd.f32 %v773, %v837
    %839 = vmatmul.f32.gmra.mxu0 %v177
    %v840 = vpop.f32.mrf.mxu0
    %v841 = vadd.f32 %v776, %v840
    %842 = vmatmul.f32.gmra.mxu0 %v193
    %v843 = vpop.f32.mrf.mxu0
    %v844 = vadd.f32 %v779, %v843
    %845 = vmatmul.f32.gmra.mxu0 %v209
    %v846 = vpop.f32.mrf.mxu0
    %v847 = vadd.f32 %v782, %v846
    %848 = vmatmul.f32.gmra.mxu0 %v225
    %v849 = vpop.f32.mrf.mxu0
    %v850 = vadd.f32 %v785, %v849
    %851 = vmatmul.f32.gmra.mxu0 %v241
    %v852 = vpop.f32.mrf.mxu0
    %v853 = vadd.f32 %v788, %v852
    %854 = vmatmul.f32.gmra.mxu0 %v257
    %v855 = vpop.f32.mrf.mxu0
    %v856 = vadd.f32 %v791, %v855
    %857 = vdwg.mxu0
    %858 = vmatpush.msra.mxu0 %v372
    %859 = vmatpush.msra.mxu0 %v371
    %860 = vmatpush.msra.mxu0 %v370
    %861 = vmatpush.msra.mxu0 %v369
    %862 = vmatpush.msra.mxu0 %v368
    %863 = vmatpush.msra.mxu0 %v367
    %864 = vmatpush.msra.mxu0 %v366
    %865 = vmatpush.msra.mxu0 %v365
    %866 = vmatpush.msra.mxu0 %v364
    %867 = vmatpush.msra.mxu0 %v363
    %868 = vmatpush.msra.mxu0 %v362
    %869 = vmatpush.msra.mxu0 %v361
    %870 = vmatpush.msra.mxu0 %v360
    %871 = vmatpush.msra.mxu0 %v359
    %872 = vmatpush.msra.mxu0 %v358
    %873 = vmatpush.msra.mxu0 %v357
    %874 = vmatmul.f32.gmra.mxu0 %v18
    %v875 = vpop.f32.mrf.mxu0
    %v876 = vadd.f32 %v811, %v875
    %877 = vmatmul.f32.gmra.mxu0 %v34
    %v878 = vpop.f32.mrf.mxu0
    %v879 = vadd.f32 %v814, %v878
    %880 = vmatmul.f32.gmra.mxu0 %v50
    %v881 = vpop.f32.mrf.mxu0
    %v882 = vadd.f32 %v817, %v881
    %883 = vmatmul.f32.gmra.mxu0 %v66
    %v884 = vpop.f32.mrf.mxu0
    %v885 = vadd.f32 %v820, %v884
    %886 = vmatmul.f32.gmra.mxu0 %v82
    %v887 = vpop.f32.mrf.mxu0
    %v888 = vadd.f32 %v823, %v887
    %889 = vmatmul.f32.gmra.mxu0 %v98
    %v890 = vpop.f32.mrf.mxu0
    %v891 = vadd.f32 %v826, %v890
    %892 = vmatmul.f32.gmra.mxu0 %v114
    %v893 = vpop.f32.mrf.mxu0
    %v894 = vadd.f32 %v829, %v893
    %895 = vmatmul.f32.gmra.mxu0 %v130
    %v896 = vpop.f32.mrf.mxu0
    %v897 = vadd.f32 %v832, %v896
    %898 = vmatmul.f32.gmra.mxu0 %v146
    %v899 = vpop.f32.mrf.mxu0
    %v900 = vadd.f32 %v835, %v899
    %901 = vmatmul.f32.gmra.mxu0 %v162
    %v902 = vpop.f32.mrf.mxu0
    %v903 = vadd.f32 %v838, %v902
    %904 = vmatmul.f32.gmra.mxu0 %v178
    %v905 = vpop.f32.mrf.mxu0
    %v906 = vadd.f32 %v841, %v905
    %907 = vmatmul.f32.gmra.mxu0 %v194
    %v908 = vpop.f32.mrf.mxu0
    %v909 = vadd.f32 %v844, %v908
    %910 = vmatmul.f32.gmra.mxu0 %v210
    %v911 = vpop.f32.mrf.mxu0
    %v912 = vadd.f32 %v847, %v911
    %913 = vmatmul.f32.gmra.mxu0 %v226
    %v914 = vpop.f32.mrf.mxu0
    %v915 = vadd.f32 %v850, %v914
    %916 = vmatmul.f32.gmra.mxu0 %v242
    %v917 = vpop.f32.mrf.mxu0
    %v918 = vadd.f32 %v853, %v917
    %919 = vmatmul.f32.gmra.mxu0 %v258
    %v920 = vpop.f32.mrf.mxu0
    %v921 = vadd.f32 %v856, %v920
    %922 = vdwg.mxu0
    %923 = vmatpush.msra.mxu0 %v388
    %924 = vmatpush.msra.mxu0 %v387
    %925 = vmatpush.msra.mxu0 %v386
    %926 = vmatpush.msra.mxu0 %v385
    %927 = vmatpush.msra.mxu0 %v384
    %928 = vmatpush.msra.mxu0 %v383
    %929 = vmatpush.msra.mxu0 %v382
    %930 = vmatpush.msra.mxu0 %v381
    %931 = vmatpush.msra.mxu0 %v380
    %932 = vmatpush.msra.mxu0 %v379
    %933 = vmatpush.msra.mxu0 %v378
    %934 = vmatpush.msra.mxu0 %v377
    %935 = vmatpush.msra.mxu0 %v376
    %936 = vmatpush.msra.mxu0 %v375
    %937 = vmatpush.msra.mxu0 %v374
    %938 = vmatpush.msra.mxu0 %v373
    %939 = vmatmul.f32.gmra.mxu0 %v19
    %v940 = vpop.f32.mrf.mxu0
    %v941 = vadd.f32 %v876, %v940
    %942 = vmatmul.f32.gmra.mxu0 %v35
    %v943 = vpop.f32.mrf.mxu0
    %v944 = vadd.f32 %v879, %v943
    %945 = vmatmul.f32.gmra.mxu0 %v51
    %v946 = vpop.f32.mrf.mxu0
    %v947 = vadd.f32 %v882, %v946
    %948 = vmatmul.f32.gmra.mxu0 %v67
    %v949 = vpop.f32.mrf.mxu0
    %v950 = vadd.f32 %v885, %v949
    %951 = vmatmul.f32.gmra.mxu0 %v83
    %v952 = vpop.f32.mrf.mxu0
    %v953 = vadd.f32 %v888, %v952
    %954 = vmatmul.f32.gmra.mxu0 %v99
    %v955 = vpop.f32.mrf.mxu0
    %v956 = vadd.f32 %v891, %v955
    %957 = vmatmul.f32.gmra.mxu0 %v115
    %v958 = vpop.f32.mrf.mxu0
    %v959 = vadd.f32 %v894, %v958
    %960 = vmatmul.f32.gmra.mxu0 %v131
    %v961 = vpop.f32.mrf.mxu0
    %v962 = vadd.f32 %v897, %v961
    %963 = vmatmul.f32.gmra.mxu0 %v147
    %v964 = vpop.f32.mrf.mxu0
    %v965 = vadd.f32 %v900, %v964
    %966 = vmatmul.f32.gmra.mxu0 %v163
    %v967 = vpop.f32.mrf.mxu0
    %v968 = vadd.f32 %v903, %v967
    %969 = vmatmul.f32.gmra.mxu0 %v179
    %v970 = vpop.f32.mrf.mxu0
    %v971 = vadd.f32 %v906, %v970
    %972 = vmatmul.f32.gmra.mxu0 %v195
    %v973 = vpop.f32.mrf.mxu0
    %v974 = vadd.f32 %v909, %v973
    %975 = vmatmul.f32.gmra.mxu0 %v211
    %v976 = vpop.f32.mrf.mxu0
    %v977 = vadd.f32 %v912, %v976
    %978 = vmatmul.f32.gmra.mxu0 %v227
    %v979 = vpop.f32.mrf.mxu0
    %v980 = vadd.f32 %v915, %v979
    %981 = vmatmul.f32.gmra.mxu0 %v243
    %v982 = vpop.f32.mrf.mxu0
    %v983 = vadd.f32 %v918, %v982
    %984 = vmatmul.f32.gmra.mxu0 %v259
    %v985 = vpop.f32.mrf.mxu0
    %v986 = vadd.f32 %v921, %v985
    %987 = vdwg.mxu0
    %988 = vmatpush.msra.mxu0 %v404
    %989 = vmatpush.msra.mxu0 %v403
    %990 = vmatpush.msra.mxu0 %v402
    %991 = vmatpush.msra.mxu0 %v401
    %992 = vmatpush.msra.mxu0 %v400
    %993 = vmatpush.msra.mxu0 %v399
    %994 = vmatpush.msra.mxu0 %v398
    %995 = vmatpush.msra.mxu0 %v397
    %996 = vmatpush.msra.mxu0 %v396
    %997 = vmatpush.msra.mxu0 %v395
    %998 = vmatpush.msra.mxu0 %v394
    %999 = vmatpush.msra.mxu0 %v393
    %1000 = vmatpush.msra.mxu0 %v392
    %1001 = vmatpush.msra.mxu0 %v391
    %1002 = vmatpush.msra.mxu0 %v390
    %1003 = vmatpush.msra.mxu0 %v389
    %1004 = vmatmul.f32.gmra.mxu0 %v20
    %v1005 = vpop.f32.mrf.mxu0
    %v1006 = vadd.f32 %v941, %v1005
    %1007 = vmatmul.f32.gmra.mxu0 %v36
    %v1008 = vpop.f32.mrf.mxu0
    %v1009 = vadd.f32 %v944, %v1008
    %1010 = vmatmul.f32.gmra.mxu0 %v52
    %v1011 = vpop.f32.mrf.mxu0
    %v1012 = vadd.f32 %v947, %v1011
    %1013 = vmatmul.f32.gmra.mxu0 %v68
    %v1014 = vpop.f32.mrf.mxu0
    %v1015 = vadd.f32 %v950, %v1014
    %1016 = vmatmul.f32.gmra.mxu0 %v84
    %v1017 = vpop.f32.mrf.mxu0
    %v1018 = vadd.f32 %v953, %v1017
    %1019 = vmatmul.f32.gmra.mxu0 %v100
    %v1020 = vpop.f32.mrf.mxu0
    %v1021 = vadd.f32 %v956, %v1020
    %1022 = vmatmul.f32.gmra.mxu0 %v116
    %v1023 = vpop.f32.mrf.mxu0
    %v1024 = vadd.f32 %v959, %v1023
    %1025 = vmatmul.f32.gmra.mxu0 %v132
    %v1026 = vpop.f32.mrf.mxu0
    %v1027 = vadd.f32 %v962, %v1026
    %1028 = vmatmul.f32.gmra.mxu0 %v148
    %v1029 = vpop.f32.mrf.mxu0
    %v1030 = vadd.f32 %v965, %v1029
    %1031 = vmatmul.f32.gmra.mxu0 %v164
    %v1032 = vpop.f32.mrf.mxu0
    %v1033 = vadd.f32 %v968, %v1032
    %1034 = vmatmul.f32.gmra.mxu0 %v180
    %v1035 = vpop.f32.mrf.mxu0
    %v1036 = vadd.f32 %v971, %v1035
    %1037 = vmatmul.f32.gmra.mxu0 %v196
    %v1038 = vpop.f32.mrf.mxu0
    %v1039 = vadd.f32 %v974, %v1038
    %1040 = vmatmul.f32.gmra.mxu0 %v212
    %v1041 = vpop.f32.mrf.mxu0
    %v1042 = vadd.f32 %v977, %v1041
    %1043 = vmatmul.f32.gmra.mxu0 %v228
    %v1044 = vpop.f32.mrf.mxu0
    %v1045 = vadd.f32 %v980, %v1044
    %1046 = vmatmul.f32.gmra.mxu0 %v244
    %v1047 = vpop.f32.mrf.mxu0
    %v1048 = vadd.f32 %v983, %v1047
    %1049 = vmatmul.f32.gmra.mxu0 %v260
    %v1050 = vpop.f32.mrf.mxu0
    %v1051 = vadd.f32 %v986, %v1050
    %1052 = vdwg.mxu0
    %1053 = vmatpush.msra.mxu0 %v420
    %1054 = vmatpush.msra.mxu0 %v419
    %1055 = vmatpush.msra.mxu0 %v418
    %1056 = vmatpush.msra.mxu0 %v417
    %1057 = vmatpush.msra.mxu0 %v416
    %1058 = vmatpush.msra.mxu0 %v415
    %1059 = vmatpush.msra.mxu0 %v414
    %1060 = vmatpush.msra.mxu0 %v413
    %1061 = vmatpush.msra.mxu0 %v412
    %1062 = vmatpush.msra.mxu0 %v411
    %1063 = vmatpush.msra.mxu0 %v410
    %1064 = vmatpush.msra.mxu0 %v409
    %1065 = vmatpush.msra.mxu0 %v408
    %1066 = vmatpush.msra.mxu0 %v407
    %1067 = vmatpush.msra.mxu0 %v406
    %1068 = vmatpush.msra.mxu0 %v405
    %1069 = vmatmul.f32.gmra.mxu0 %v21
    %v1070 = vpop.f32.mrf.mxu0
    %v1071 = vadd.f32 %v1006, %v1070
    %1072 = vmatmul.f32.gmra.mxu0 %v37
    %v1073 = vpop.f32.mrf.mxu0
    %v1074 = vadd.f32 %v1009, %v1073
    %1075 = vmatmul.f32.gmra.mxu0 %v53
    %v1076 = vpop.f32.mrf.mxu0
    %v1077 = vadd.f32 %v1012, %v1076
    %1078 = vmatmul.f32.gmra.mxu0 %v69
    %v1079 = vpop.f32.mrf.mxu0
    %v1080 = vadd.f32 %v1015, %v1079
    %1081 = vmatmul.f32.gmra.mxu0 %v85
    %v1082 = vpop.f32.mrf.mxu0
    %v1083 = vadd.f32 %v1018, %v1082
    %1084 = vmatmul.f32.gmra.mxu0 %v101
    %v1085 = vpop.f32.mrf.mxu0
    %v1086 = vadd.f32 %v1021, %v1085
    %1087 = vmatmul.f32.gmra.mxu0 %v117
    %v1088 = vpop.f32.mrf.mxu0
    %v1089 = vadd.f32 %v1024, %v1088
    %1090 = vmatmul.f32.gmra.mxu0 %v133
    %v1091 = vpop.f32.mrf.mxu0
    %v1092 = vadd.f32 %v1027, %v1091
    %1093 = vmatmul.f32.gmra.mxu0 %v149
    %v1094 = vpop.f32.mrf.mxu0
    %v1095 = vadd.f32 %v1030, %v1094
    %1096 = vmatmul.f32.gmra.mxu0 %v165
    %v1097 = vpop.f32.mrf.mxu0
    %v1098 = vadd.f32 %v1033, %v1097
    %1099 = vmatmul.f32.gmra.mxu0 %v181
    %v1100 = vpop.f32.mrf.mxu0
    %v1101 = vadd.f32 %v1036, %v1100
    %1102 = vmatmul.f32.gmra.mxu0 %v197
    %v1103 = vpop.f32.mrf.mxu0
    %v1104 = vadd.f32 %v1039, %v1103
    %1105 = vmatmul.f32.gmra.mxu0 %v213
    %v1106 = vpop.f32.mrf.mxu0
    %v1107 = vadd.f32 %v1042, %v1106
    %1108 = vmatmul.f32.gmra.mxu0 %v229
    %v1109 = vpop.f32.mrf.mxu0
    %v1110 = vadd.f32 %v1045, %v1109
    %1111 = vmatmul.f32.gmra.mxu0 %v245
    %v1112 = vpop.f32.mrf.mxu0
    %v1113 = vadd.f32 %v1048, %v1112
    %1114 = vmatmul.f32.gmra.mxu0 %v261
    %v1115 = vpop.f32.mrf.mxu0
    %v1116 = vadd.f32 %v1051, %v1115
    %1117 = vdwg.mxu0
    %1118 = vmatpush.msra.mxu0 %v436
    %1119 = vmatpush.msra.mxu0 %v435
    %1120 = vmatpush.msra.mxu0 %v434
    %1121 = vmatpush.msra.mxu0 %v433
    %1122 = vmatpush.msra.mxu0 %v432
    %1123 = vmatpush.msra.mxu0 %v431
    %1124 = vmatpush.msra.mxu0 %v430
    %1125 = vmatpush.msra.mxu0 %v429
    %1126 = vmatpush.msra.mxu0 %v428
    %1127 = vmatpush.msra.mxu0 %v427
    %1128 = vmatpush.msra.mxu0 %v426
    %1129 = vmatpush.msra.mxu0 %v425
    %1130 = vmatpush.msra.mxu0 %v424
    %1131 = vmatpush.msra.mxu0 %v423
    %1132 = vmatpush.msra.mxu0 %v422
    %1133 = vmatpush.msra.mxu0 %v421
    %1134 = vmatmul.f32.gmra.mxu0 %v22
    %v1135 = vpop.f32.mrf.mxu0
    %v1136 = vadd.f32 %v1071, %v1135
    %1137 = vmatmul.f32.gmra.mxu0 %v38
    %v1138 = vpop.f32.mrf.mxu0
    %v1139 = vadd.f32 %v1074, %v1138
    %1140 = vmatmul.f32.gmra.mxu0 %v54
    %v1141 = vpop.f32.mrf.mxu0
    %v1142 = vadd.f32 %v1077, %v1141
    %1143 = vmatmul.f32.gmra.mxu0 %v70
    %v1144 = vpop.f32.mrf.mxu0
    %v1145 = vadd.f32 %v1080, %v1144
    %1146 = vmatmul.f32.gmra.mxu0 %v86
    %v1147 = vpop.f32.mrf.mxu0
    %v1148 = vadd.f32 %v1083, %v1147
    %1149 = vmatmul.f32.gmra.mxu0 %v102
    %v1150 = vpop.f32.mrf.mxu0
    %v1151 = vadd.f32 %v1086, %v1150
    %1152 = vmatmul.f32.gmra.mxu0 %v118
    %v1153 = vpop.f32.mrf.mxu0
    %v1154 = vadd.f32 %v1089, %v1153
    %1155 = vmatmul.f32.gmra.mxu0 %v134
    %v1156 = vpop.f32.mrf.mxu0
    %v1157 = vadd.f32 %v1092, %v1156
    %1158 = vmatmul.f32.gmra.mxu0 %v150
    %v1159 = vpop.f32.mrf.mxu0
    %v1160 = vadd.f32 %v1095, %v1159
    %1161 = vmatmul.f32.gmra.mxu0 %v166
    %v1162 = vpop.f32.mrf.mxu0
    %v1163 = vadd.f32 %v1098, %v1162
    %1164 = vmatmul.f32.gmra.mxu0 %v182
    %v1165 = vpop.f32.mrf.mxu0
    %v1166 = vadd.f32 %v1101, %v1165
    %1167 = vmatmul.f32.gmra.mxu0 %v198
    %v1168 = vpop.f32.mrf.mxu0
    %v1169 = vadd.f32 %v1104, %v1168
    %1170 = vmatmul.f32.gmra.mxu0 %v214
    %v1171 = vpop.f32.mrf.mxu0
    %v1172 = vadd.f32 %v1107, %v1171
    %1173 = vmatmul.f32.gmra.mxu0 %v230
    %v1174 = vpop.f32.mrf.mxu0
    %v1175 = vadd.f32 %v1110, %v1174
    %1176 = vmatmul.f32.gmra.mxu0 %v246
    %v1177 = vpop.f32.mrf.mxu0
    %v1178 = vadd.f32 %v1113, %v1177
    %1179 = vmatmul.f32.gmra.mxu0 %v262
    %v1180 = vpop.f32.mrf.mxu0
    %v1181 = vadd.f32 %v1116, %v1180
    %1182 = vdwg.mxu0
    %1183 = vmatpush.msra.mxu0 %v452
    %1184 = vmatpush.msra.mxu0 %v451
    %1185 = vmatpush.msra.mxu0 %v450
    %1186 = vmatpush.msra.mxu0 %v449
    %1187 = vmatpush.msra.mxu0 %v448
    %1188 = vmatpush.msra.mxu0 %v447
    %1189 = vmatpush.msra.mxu0 %v446
    %1190 = vmatpush.msra.mxu0 %v445
    %1191 = vmatpush.msra.mxu0 %v444
    %1192 = vmatpush.msra.mxu0 %v443
    %1193 = vmatpush.msra.mxu0 %v442
    %1194 = vmatpush.msra.mxu0 %v441
    %1195 = vmatpush.msra.mxu0 %v440
    %1196 = vmatpush.msra.mxu0 %v439
    %1197 = vmatpush.msra.mxu0 %v438
    %1198 = vmatpush.msra.mxu0 %v437
    %1199 = vmatmul.f32.gmra.mxu0 %v23
    %v1200 = vpop.f32.mrf.mxu0
    %v1201 = vadd.f32 %v1136, %v1200
    %1202 = vmatmul.f32.gmra.mxu0 %v39
    %v1203 = vpop.f32.mrf.mxu0
    %v1204 = vadd.f32 %v1139, %v1203
    %1205 = vmatmul.f32.gmra.mxu0 %v55
    %v1206 = vpop.f32.mrf.mxu0
    %v1207 = vadd.f32 %v1142, %v1206
    %1208 = vmatmul.f32.gmra.mxu0 %v71
    %v1209 = vpop.f32.mrf.mxu0
    %v1210 = vadd.f32 %v1145, %v1209
    %1211 = vmatmul.f32.gmra.mxu0 %v87
    %v1212 = vpop.f32.mrf.mxu0
    %v1213 = vadd.f32 %v1148, %v1212
    %1214 = vmatmul.f32.gmra.mxu0 %v103
    %v1215 = vpop.f32.mrf.mxu0
    %v1216 = vadd.f32 %v1151, %v1215
    %1217 = vmatmul.f32.gmra.mxu0 %v119
    %v1218 = vpop.f32.mrf.mxu0
    %v1219 = vadd.f32 %v1154, %v1218
    %1220 = vmatmul.f32.gmra.mxu0 %v135
    %v1221 = vpop.f32.mrf.mxu0
    %v1222 = vadd.f32 %v1157, %v1221
    %1223 = vmatmul.f32.gmra.mxu0 %v151
    %v1224 = vpop.f32.mrf.mxu0
    %v1225 = vadd.f32 %v1160, %v1224
    %1226 = vmatmul.f32.gmra.mxu0 %v167
    %v1227 = vpop.f32.mrf.mxu0
    %v1228 = vadd.f32 %v1163, %v1227
    %1229 = vmatmul.f32.gmra.mxu0 %v183
    %v1230 = vpop.f32.mrf.mxu0
    %v1231 = vadd.f32 %v1166, %v1230
    %1232 = vmatmul.f32.gmra.mxu0 %v199
    %v1233 = vpop.f32.mrf.mxu0
    %v1234 = vadd.f32 %v1169, %v1233
    %1235 = vmatmul.f32.gmra.mxu0 %v215
    %v1236 = vpop.f32.mrf.mxu0
    %v1237 = vadd.f32 %v1172, %v1236
    %1238 = vmatmul.f32.gmra.mxu0 %v231
    %v1239 = vpop.f32.mrf.mxu0
    %v1240 = vadd.f32 %v1175, %v1239
    %1241 = vmatmul.f32.gmra.mxu0 %v247
    %v1242 = vpop.f32.mrf.mxu0
    %v1243 = vadd.f32 %v1178, %v1242
    %1244 = vmatmul.f32.gmra.mxu0 %v263
    %v1245 = vpop.f32.mrf.mxu0
    %v1246 = vadd.f32 %v1181, %v1245
    %1247 = vdwg.mxu0
    %1248 = vmatpush.msra.mxu0 %v468
    %1249 = vmatpush.msra.mxu0 %v467
    %1250 = vmatpush.msra.mxu0 %v466
    %1251 = vmatpush.msra.mxu0 %v465
    %1252 = vmatpush.msra.mxu0 %v464
    %1253 = vmatpush.msra.mxu0 %v463
    %1254 = vmatpush.msra.mxu0 %v462
    %1255 = vmatpush.msra.mxu0 %v461
    %1256 = vmatpush.msra.mxu0 %v460
    %1257 = vmatpush.msra.mxu0 %v459
    %1258 = vmatpush.msra.mxu0 %v458
    %1259 = vmatpush.msra.mxu0 %v457
    %1260 = vmatpush.msra.mxu0 %v456
    %1261 = vmatpush.msra.mxu0 %v455
    %1262 = vmatpush.msra.mxu0 %v454
    %1263 = vmatpush.msra.mxu0 %v453
    %1264 = vmatmul.f32.gmra.mxu0 %v24
    %v1265 = vpop.f32.mrf.mxu0
    %v1266 = vadd.f32 %v1201, %v1265
    %1267 = vmatmul.f32.gmra.mxu0 %v40
    %v1268 = vpop.f32.mrf.mxu0
    %v1269 = vadd.f32 %v1204, %v1268
    %1270 = vmatmul.f32.gmra.mxu0 %v56
    %v1271 = vpop.f32.mrf.mxu0
    %v1272 = vadd.f32 %v1207, %v1271
    %1273 = vmatmul.f32.gmra.mxu0 %v72
    %v1274 = vpop.f32.mrf.mxu0
    %v1275 = vadd.f32 %v1210, %v1274
    %1276 = vmatmul.f32.gmra.mxu0 %v88
    %v1277 = vpop.f32.mrf.mxu0
    %v1278 = vadd.f32 %v1213, %v1277
    %1279 = vmatmul.f32.gmra.mxu0 %v104
    %v1280 = vpop.f32.mrf.mxu0
    %v1281 = vadd.f32 %v1216, %v1280
    %1282 = vmatmul.f32.gmra.mxu0 %v120
    %v1283 = vpop.f32.mrf.mxu0
    %v1284 = vadd.f32 %v1219, %v1283
    %1285 = vmatmul.f32.gmra.mxu0 %v136
    %v1286 = vpop.f32.mrf.mxu0
    %v1287 = vadd.f32 %v1222, %v1286
    %1288 = vmatmul.f32.gmra.mxu0 %v152
    %v1289 = vpop.f32.mrf.mxu0
    %v1290 = vadd.f32 %v1225, %v1289
    %1291 = vmatmul.f32.gmra.mxu0 %v168
    %v1292 = vpop.f32.mrf.mxu0
    %v1293 = vadd.f32 %v1228, %v1292
    %1294 = vmatmul.f32.gmra.mxu0 %v184
    %v1295 = vpop.f32.mrf.mxu0
    %v1296 = vadd.f32 %v1231, %v1295
    %1297 = vmatmul.f32.gmra.mxu0 %v200
    %v1298 = vpop.f32.mrf.mxu0
    %v1299 = vadd.f32 %v1234, %v1298
    %1300 = vmatmul.f32.gmra.mxu0 %v216
    %v1301 = vpop.f32.mrf.mxu0
    %v1302 = vadd.f32 %v1237, %v1301
    %1303 = vmatmul.f32.gmra.mxu0 %v232
    %v1304 = vpop.f32.mrf.mxu0
    %v1305 = vadd.f32 %v1240, %v1304
    %1306 = vmatmul.f32.gmra.mxu0 %v248
    %v1307 = vpop.f32.mrf.mxu0
    %v1308 = vadd.f32 %v1243, %v1307
    %1309 = vmatmul.f32.gmra.mxu0 %v264
    %v1310 = vpop.f32.mrf.mxu0
    %v1311 = vadd.f32 %v1246, %v1310
    %1312 = vdwg.mxu0
    %1313 = vmatpush.msra.mxu0 %v484
    %1314 = vmatpush.msra.mxu0 %v483
    %1315 = vmatpush.msra.mxu0 %v482
    %1316 = vmatpush.msra.mxu0 %v481
    %1317 = vmatpush.msra.mxu0 %v480
    %1318 = vmatpush.msra.mxu0 %v479
    %1319 = vmatpush.msra.mxu0 %v478
    %1320 = vmatpush.msra.mxu0 %v477
    %1321 = vmatpush.msra.mxu0 %v476
    %1322 = vmatpush.msra.mxu0 %v475
    %1323 = vmatpush.msra.mxu0 %v474
    %1324 = vmatpush.msra.mxu0 %v473
    %1325 = vmatpush.msra.mxu0 %v472
    %1326 = vmatpush.msra.mxu0 %v471
    %1327 = vmatpush.msra.mxu0 %v470
    %1328 = vmatpush.msra.mxu0 %v469
    %1329 = vmatmul.f32.gmra.mxu0 %v25
    %v1330 = vpop.f32.mrf.mxu0
    %v1331 = vadd.f32 %v1266, %v1330
    %1332 = vmatmul.f32.gmra.mxu0 %v41
    %v1333 = vpop.f32.mrf.mxu0
    %v1334 = vadd.f32 %v1269, %v1333
    %1335 = vmatmul.f32.gmra.mxu0 %v57
    %v1336 = vpop.f32.mrf.mxu0
    %v1337 = vadd.f32 %v1272, %v1336
    %1338 = vmatmul.f32.gmra.mxu0 %v73
    %v1339 = vpop.f32.mrf.mxu0
    %v1340 = vadd.f32 %v1275, %v1339
    %1341 = vmatmul.f32.gmra.mxu0 %v89
    %v1342 = vpop.f32.mrf.mxu0
    %v1343 = vadd.f32 %v1278, %v1342
    %1344 = vmatmul.f32.gmra.mxu0 %v105
    %v1345 = vpop.f32.mrf.mxu0
    %v1346 = vadd.f32 %v1281, %v1345
    %1347 = vmatmul.f32.gmra.mxu0 %v121
    %v1348 = vpop.f32.mrf.mxu0
    %v1349 = vadd.f32 %v1284, %v1348
    %1350 = vmatmul.f32.gmra.mxu0 %v137
    %v1351 = vpop.f32.mrf.mxu0
    %v1352 = vadd.f32 %v1287, %v1351
    %1353 = vmatmul.f32.gmra.mxu0 %v153
    %v1354 = vpop.f32.mrf.mxu0
    %v1355 = vadd.f32 %v1290, %v1354
    %1356 = vmatmul.f32.gmra.mxu0 %v169
    %v1357 = vpop.f32.mrf.mxu0
    %v1358 = vadd.f32 %v1293, %v1357
    %1359 = vmatmul.f32.gmra.mxu0 %v185
    %v1360 = vpop.f32.mrf.mxu0
    %v1361 = vadd.f32 %v1296, %v1360
    %1362 = vmatmul.f32.gmra.mxu0 %v201
    %v1363 = vpop.f32.mrf.mxu0
    %v1364 = vadd.f32 %v1299, %v1363
    %1365 = vmatmul.f32.gmra.mxu0 %v217
    %v1366 = vpop.f32.mrf.mxu0
    %v1367 = vadd.f32 %v1302, %v1366
    %1368 = vmatmul.f32.gmra.mxu0 %v233
    %v1369 = vpop.f32.mrf.mxu0
    %v1370 = vadd.f32 %v1305, %v1369
    %1371 = vmatmul.f32.gmra.mxu0 %v249
    %v1372 = vpop.f32.mrf.mxu0
    %v1373 = vadd.f32 %v1308, %v1372
    %1374 = vmatmul.f32.gmra.mxu0 %v265
    %v1375 = vpop.f32.mrf.mxu0
    %v1376 = vadd.f32 %v1311, %v1375
    %1377 = vdwg.mxu0
    %1378 = vmatpush.msra.mxu0 %v500
    %1379 = vmatpush.msra.mxu0 %v499
    %1380 = vmatpush.msra.mxu0 %v498
    %1381 = vmatpush.msra.mxu0 %v497
    %1382 = vmatpush.msra.mxu0 %v496
    %1383 = vmatpush.msra.mxu0 %v495
    %1384 = vmatpush.msra.mxu0 %v494
    %1385 = vmatpush.msra.mxu0 %v493
    %1386 = vmatpush.msra.mxu0 %v492
    %1387 = vmatpush.msra.mxu0 %v491
    %1388 = vmatpush.msra.mxu0 %v490
    %1389 = vmatpush.msra.mxu0 %v489
    %1390 = vmatpush.msra.mxu0 %v488
    %1391 = vmatpush.msra.mxu0 %v487
    %1392 = vmatpush.msra.mxu0 %v486
    %1393 = vmatpush.msra.mxu0 %v485
    %1394 = vmatmul.f32.gmra.mxu0 %v26
    %v1395 = vpop.f32.mrf.mxu0
    %v1396 = vadd.f32 %v1331, %v1395
    %1397 = vmatmul.f32.gmra.mxu0 %v42
    %v1398 = vpop.f32.mrf.mxu0
    %v1399 = vadd.f32 %v1334, %v1398
    %1400 = vmatmul.f32.gmra.mxu0 %v58
    %v1401 = vpop.f32.mrf.mxu0
    %v1402 = vadd.f32 %v1337, %v1401
    %1403 = vmatmul.f32.gmra.mxu0 %v74
    %v1404 = vpop.f32.mrf.mxu0
    %v1405 = vadd.f32 %v1340, %v1404
    %1406 = vmatmul.f32.gmra.mxu0 %v90
    %v1407 = vpop.f32.mrf.mxu0
    %v1408 = vadd.f32 %v1343, %v1407
    %1409 = vmatmul.f32.gmra.mxu0 %v106
    %v1410 = vpop.f32.mrf.mxu0
    %v1411 = vadd.f32 %v1346, %v1410
    %1412 = vmatmul.f32.gmra.mxu0 %v122
    %v1413 = vpop.f32.mrf.mxu0
    %v1414 = vadd.f32 %v1349, %v1413
    %1415 = vmatmul.f32.gmra.mxu0 %v138
    %v1416 = vpop.f32.mrf.mxu0
    %v1417 = vadd.f32 %v1352, %v1416
    %1418 = vmatmul.f32.gmra.mxu0 %v154
    %v1419 = vpop.f32.mrf.mxu0
    %v1420 = vadd.f32 %v1355, %v1419
    %1421 = vmatmul.f32.gmra.mxu0 %v170
    %v1422 = vpop.f32.mrf.mxu0
    %v1423 = vadd.f32 %v1358, %v1422
    %1424 = vmatmul.f32.gmra.mxu0 %v186
    %v1425 = vpop.f32.mrf.mxu0
    %v1426 = vadd.f32 %v1361, %v1425
    %1427 = vmatmul.f32.gmra.mxu0 %v202
    %v1428 = vpop.f32.mrf.mxu0
    %v1429 = vadd.f32 %v1364, %v1428
    %1430 = vmatmul.f32.gmra.mxu0 %v218
    %v1431 = vpop.f32.mrf.mxu0
    %v1432 = vadd.f32 %v1367, %v1431
    %1433 = vmatmul.f32.gmra.mxu0 %v234
    %v1434 = vpop.f32.mrf.mxu0
    %v1435 = vadd.f32 %v1370, %v1434
    %1436 = vmatmul.f32.gmra.mxu0 %v250
    %v1437 = vpop.f32.mrf.mxu0
    %v1438 = vadd.f32 %v1373, %v1437
    %1439 = vmatmul.f32.gmra.mxu0 %v266
    %v1440 = vpop.f32.mrf.mxu0
    %v1441 = vadd.f32 %v1376, %v1440
    %1442 = vdwg.mxu0
    %1443 = vmatpush.msra.mxu0 %v516
    %1444 = vmatpush.msra.mxu0 %v515
    %1445 = vmatpush.msra.mxu0 %v514
    %1446 = vmatpush.msra.mxu0 %v513
    %1447 = vmatpush.msra.mxu0 %v512
    %1448 = vmatpush.msra.mxu0 %v511
    %1449 = vmatpush.msra.mxu0 %v510
    %1450 = vmatpush.msra.mxu0 %v509
    %1451 = vmatpush.msra.mxu0 %v508
    %1452 = vmatpush.msra.mxu0 %v507
    %1453 = vmatpush.msra.mxu0 %v506
    %1454 = vmatpush.msra.mxu0 %v505
    %1455 = vmatpush.msra.mxu0 %v504
    %1456 = vmatpush.msra.mxu0 %v503
    %1457 = vmatpush.msra.mxu0 %v502
    %1458 = vmatpush.msra.mxu0 %v501
    %1459 = vmatmul.f32.gmra.mxu0 %v27
    %v1460 = vpop.f32.mrf.mxu0
    %v1461 = vadd.f32 %v1396, %v1460
    %1462 = vmatmul.f32.gmra.mxu0 %v43
    %v1463 = vpop.f32.mrf.mxu0
    %v1464 = vadd.f32 %v1399, %v1463
    %1465 = vmatmul.f32.gmra.mxu0 %v59
    %v1466 = vpop.f32.mrf.mxu0
    %v1467 = vadd.f32 %v1402, %v1466
    %1468 = vmatmul.f32.gmra.mxu0 %v75
    %v1469 = vpop.f32.mrf.mxu0
    %v1470 = vadd.f32 %v1405, %v1469
    %1471 = vmatmul.f32.gmra.mxu0 %v91
    %v1472 = vpop.f32.mrf.mxu0
    %v1473 = vadd.f32 %v1408, %v1472
    %1474 = vmatmul.f32.gmra.mxu0 %v107
    %v1475 = vpop.f32.mrf.mxu0
    %v1476 = vadd.f32 %v1411, %v1475
    %1477 = vmatmul.f32.gmra.mxu0 %v123
    %v1478 = vpop.f32.mrf.mxu0
    %v1479 = vadd.f32 %v1414, %v1478
    %1480 = vmatmul.f32.gmra.mxu0 %v139
    %v1481 = vpop.f32.mrf.mxu0
    %v1482 = vadd.f32 %v1417, %v1481
    %1483 = vmatmul.f32.gmra.mxu0 %v155
    %v1484 = vpop.f32.mrf.mxu0
    %v1485 = vadd.f32 %v1420, %v1484
    %1486 = vmatmul.f32.gmra.mxu0 %v171
    %v1487 = vpop.f32.mrf.mxu0
    %v1488 = vadd.f32 %v1423, %v1487
    %1489 = vmatmul.f32.gmra.mxu0 %v187
    %v1490 = vpop.f32.mrf.mxu0
    %v1491 = vadd.f32 %v1426, %v1490
    %1492 = vmatmul.f32.gmra.mxu0 %v203
    %v1493 = vpop.f32.mrf.mxu0
    %v1494 = vadd.f32 %v1429, %v1493
    %1495 = vmatmul.f32.gmra.mxu0 %v219
    %v1496 = vpop.f32.mrf.mxu0
    %v1497 = vadd.f32 %v1432, %v1496
    %1498 = vmatmul.f32.gmra.mxu0 %v235
    %v1499 = vpop.f32.mrf.mxu0
    %v1500 = vadd.f32 %v1435, %v1499
    %1501 = vmatmul.f32.gmra.mxu0 %v251
    %v1502 = vpop.f32.mrf.mxu0
    %v1503 = vadd.f32 %v1438, %v1502
    %1504 = vmatmul.f32.gmra.mxu0 %v267
    %v1505 = vpop.f32.mrf.mxu0
    %v1506 = vadd.f32 %v1441, %v1505
    %1507 = vdwg.mxu0
    %1508 = vmatpush.msra.mxu0 %v532
    %1509 = vmatpush.msra.mxu0 %v531
    %1510 = vmatpush.msra.mxu0 %v530
    %1511 = vmatpush.msra.mxu0 %v529
    %1512 = vmatpush.msra.mxu0 %v528
    %1513 = vmatpush.msra.mxu0 %v527
    %1514 = vmatpush.msra.mxu0 %v526
    %1515 = vmatpush.msra.mxu0 %v525
    %1516 = vmatpush.msra.mxu0 %v524
    %1517 = vmatpush.msra.mxu0 %v523
    %1518 = vmatpush.msra.mxu0 %v522
    %1519 = vmatpush.msra.mxu0 %v521
    %1520 = vmatpush.msra.mxu0 %v520
    %1521 = vmatpush.msra.mxu0 %v519
    %1522 = vmatpush.msra.mxu0 %v518
    %1523 = vmatpush.msra.mxu0 %v517
    %1524 = vmatmul.f32.gmra.mxu0 %v28
    %v1525 = vpop.f32.mrf.mxu0
    %v1526 = vadd.f32 %v1461, %v1525
    %1527 = vmatmul.f32.gmra.mxu0 %v44
    %v1528 = vpop.f32.mrf.mxu0
    %v1529 = vadd.f32 %v1464, %v1528
    %1530 = vmatmul.f32.gmra.mxu0 %v60
    %v1531 = vpop.f32.mrf.mxu0
    %v1532 = vadd.f32 %v1467, %v1531
    %1533 = vmatmul.f32.gmra.mxu0 %v76
    %v1534 = vpop.f32.mrf.mxu0
    %v1535 = vadd.f32 %v1470, %v1534
    %1536 = vmatmul.f32.gmra.mxu0 %v92
    %v1537 = vpop.f32.mrf.mxu0
    %v1538 = vadd.f32 %v1473, %v1537
    %1539 = vmatmul.f32.gmra.mxu0 %v108
    %v1540 = vpop.f32.mrf.mxu0
    %v1541 = vadd.f32 %v1476, %v1540
    %1542 = vmatmul.f32.gmra.mxu0 %v124
    %v1543 = vpop.f32.mrf.mxu0
    %v1544 = vadd.f32 %v1479, %v1543
    %1545 = vmatmul.f32.gmra.mxu0 %v140
    %v1546 = vpop.f32.mrf.mxu0
    %v1547 = vadd.f32 %v1482, %v1546
    %1548 = vmatmul.f32.gmra.mxu0 %v156
    %v1549 = vpop.f32.mrf.mxu0
    %v1550 = vadd.f32 %v1485, %v1549
    %1551 = vmatmul.f32.gmra.mxu0 %v172
    %v1552 = vpop.f32.mrf.mxu0
    %v1553 = vadd.f32 %v1488, %v1552
    %1554 = vmatmul.f32.gmra.mxu0 %v188
    %v1555 = vpop.f32.mrf.mxu0
    %v1556 = vadd.f32 %v1491, %v1555
    %1557 = vmatmul.f32.gmra.mxu0 %v204
    %v1558 = vpop.f32.mrf.mxu0
    %v1559 = vadd.f32 %v1494, %v1558
    %1560 = vmatmul.f32.gmra.mxu0 %v220
    %v1561 = vpop.f32.mrf.mxu0
    %v1562 = vadd.f32 %v1497, %v1561
    %1563 = vmatmul.f32.gmra.mxu0 %v236
    %v1564 = vpop.f32.mrf.mxu0
    %v1565 = vadd.f32 %v1500, %v1564
    %1566 = vmatmul.f32.gmra.mxu0 %v252
    %v1567 = vpop.f32.mrf.mxu0
    %v1568 = vadd.f32 %v1503, %v1567
    %1569 = vmatmul.f32.gmra.mxu0 %v268
    %v1570 = vpop.f32.mrf.mxu0
    %v1571 = vadd.f32 %v1506, %v1570
    %1572 = vdwg.mxu0
    %s1573 = smul.u32 %s270, 24
    %s1574 = scalar_lea.vmem %s2, %s1573
    %vm1575 = vcmask 523264
    %1576 = vst.msk [vmem:[%s1574] sm:$0xff] %vm1575, %v1526
    %1577 = vst.msk [vmem:[%s1574 + $0x8] sm:$0xff] %vm1575, %v1529
    %vm1578 = vcmask 518144
    %1579 = vst.msk [vmem:[%s1574 + $0x10] sm:$0x7] %vm1578, %v1532
    %v1580 = vsel %vm1575, %v1526, 0.0
    %1581 = vadd.xlane.f32.xlu0 %v1580
    %v1582 = vpop.xlane.xlu0 %1581
    %v1583 = vsel %vm1575, %v1529, 0.0
    %1584 = vadd.xlane.f32.xlu0 %v1583
    %v1585 = vpop.xlane.xlu0 %1584
    %v1586 = vsel %vm1575, %v1532, 0.0
    %1587 = vadd.xlane.f32.xlu0 %v1586
    %v1588 = vpop.xlane.xlu0 %1587
    %v1589 = vsel %vm1575, %v1535, 0.0
    %1590 = vadd.xlane.f32.xlu0 %v1589
    %v1591 = vpop.xlane.xlu0 %1590
    %v1592 = vsel %vm1575, %v1538, 0.0
    %1593 = vadd.xlane.f32.xlu0 %v1592
    %v1594 = vpop.xlane.xlu0 %1593
    %v1595 = vsel %vm1575, %v1541, 0.0
    %1596 = vadd.xlane.f32.xlu0 %v1595
    %v1597 = vpop.xlane.xlu0 %1596
    %v1598 = vsel %vm1575, %v1544, 0.0
    %1599 = vadd.xlane.f32.xlu0 %v1598
    %v1600 = vpop.xlane.xlu0 %1599
    %v1601 = vsel %vm1575, %v1547, 0.0
    %1602 = vadd.xlane.f32.xlu0 %v1601
    %v1603 = vpop.xlane.xlu0 %1602
    %v1604 = vsel %vm1575, %v1550, 0.0
    %1605 = vadd.xlane.f32.xlu0 %v1604
    %v1606 = vpop.xlane.xlu0 %1605
    %v1607 = vsel %vm1575, %v1553, 0.0
    %1608 = vadd.xlane.f32.xlu0 %v1607
    %v1609 = vpop.xlane.xlu0 %1608
    %v1610 = vsel %vm1575, %v1556, 0.0
    %1611 = vadd.xlane.f32.xlu0 %v1610
    %v1612 = vpop.xlane.xlu0 %1611
    %v1613 = vsel %vm1575, %v1559, 0.0
    %1614 = vadd.xlane.f32.xlu0 %v1613
    %v1615 = vpop.xlane.xlu0 %1614
    %v1616 = vsel %vm1575, %v1562, 0.0
    %1617 = vadd.xlane.f32.xlu0 %v1616
    %v1618 = vpop.xlane.xlu0 %1617
    %v1619 = vsel %vm1575, %v1565, 0.0
    %1620 = vadd.xlane.f32.xlu0 %v1619
    %v1621 = vpop.xlane.xlu0 %1620
    %v1622 = vsel %vm1575, %v1568, 0.0
    %1623 = vadd.xlane.f32.xlu0 %v1622
    %v1624 = vpop.xlane.xlu0 %1623
    %v1625 = vsel %vm1575, %v1571, 0.0
    %1626 = vadd.xlane.f32.xlu0 %v1625
    %v1627 = vpop.xlane.xlu0 %1626
    %v1628 = vrcp.pop 64.0
    %v1629 = vmul.f32 64.0, %v1628
    %v1630 = vsub.f32 1.0, %v1629
    %v1631 = vmul.f32 %v1628, %v1630
    %v1632 = vadd.f32 %v1628, %v1631
    %vm1633 = vweird.f32 %v1628
    %v1634 = vsel %vm1633, %v1628, %v1632
    %v1635 = vmul.f32 %v1582, %v1634
    %v1636 = vmul.f32 %v1585, %v1634
    %v1637 = vmul.f32 %v1588, %v1634
    %v1638 = vmul.f32 %v1591, %v1634
    %v1639 = vmul.f32 %v1594, %v1634
    %v1640 = vmul.f32 %v1597, %v1634
    %v1641 = vmul.f32 %v1600, %v1634
    %v1642 = vmul.f32 %v1603, %v1634
    %v1643 = vmul.f32 %v1606, %v1634
    %v1644 = vmul.f32 %v1609, %v1634
    %v1645 = vmul.f32 %v1612, %v1634
    %v1646 = vmul.f32 %v1615, %v1634
    %v1647 = vmul.f32 %v1618, %v1634
    %v1648 = vmul.f32 %v1621, %v1634
    %v1649 = vmul.f32 %v1624, %v1634
    %v1650 = vmul.f32 %v1627, %v1634
    %s1651 = smul.u32 %s270, 128
    %s1652 = scalar_lea.vmem %s3, %s1651
    %vm1653 = vcmask 7168
    %1654 = vst.msk [vmem:[%s1652] sm:$0xff] %vm1653, %v1635
    %1655 = vst.msk [vmem:[%s1652 + $0x8] sm:$0xff] %vm1653, %v1636
    %1656 = vst.msk [vmem:[%s1652 + $0x10] sm:$0xff] %vm1653, %v1637
    %1657 = vst.msk [vmem:[%s1652 + $0x18] sm:$0xff] %vm1653, %v1638
    %1658 = vst.msk [vmem:[%s1652 + $0x20] sm:$0xff] %vm1653, %v1639
    %1659 = vst.msk [vmem:[%s1652 + $0x28] sm:$0xff] %vm1653, %v1640
    %1660 = vst.msk [vmem:[%s1652 + $0x30] sm:$0xff] %vm1653, %v1641
    %1661 = vst.msk [vmem:[%s1652 + $0x38] sm:$0xff] %vm1653, %v1642
    %1662 = vst.msk [vmem:[%s1652 + $0x40] sm:$0xff] %vm1653, %v1643
    %1663 = vst.msk [vmem:[%s1652 + $0x48] sm:$0xff] %vm1653, %v1644
    %1664 = vst.msk [vmem:[%s1652 + $0x50] sm:$0xff] %vm1653, %v1645
    %1665 = vst.msk [vmem:[%s1652 + $0x58] sm:$0xff] %vm1653, %v1646
    %1666 = vst.msk [vmem:[%s1652 + $0x60] sm:$0xff] %vm1653, %v1647
    %1667 = vst.msk [vmem:[%s1652 + $0x68] sm:$0xff] %vm1653, %v1648
    %1668 = vst.msk [vmem:[%s1652 + $0x70] sm:$0xff] %vm1653, %v1649
    %1669 = vst.msk [vmem:[%s1652 + $0x78] sm:$0xff] %vm1653, %v1650
  $region14: #{classifier_forward.1} parent=0 // loop_footer
    %s274 = sadd.s32 1, %s270
  $region15: #{classifier_forward.1} parent=0 // loop_footer_branch
    %269 = sbr.rel target = $region11
  $region16: #{classifier_forward.1} parent=0 // loop_exit
    _
  // Predicated region
  $region17: #{classifier_forward.1} parent=0 // pred_check
    _
  $region18: #{classifier_forward.1} parent=0 // pred_check_branch
    %1671 = sbr.rel (0) target = $region20
  $region19: #{classifier_forward.1} parent=0 // pred_region
    _
  $region20: #{classifier_forward.1} parent=0 // pred_fallthru
    _
  // Predicated region
  $region21: #{classifier_forward.1} parent=0 // pred_check
    _
  $region22: #{classifier_forward.1} parent=0 // pred_check_branch
    %1673 = sbr.rel (0) target = $region24
  $region23: #{classifier_forward.1} parent=0 // pred_region
    _
  $region24: #{classifier_forward.1} parent=0 // pred_fallthru
    _
  // Predicated region
  $region25: #{classifier_forward.1} parent=0 // pred_check
    _
  $region26: #{classifier_forward.1} parent=0 // pred_check_branch
    %1675 = sbr.rel (0) target = $region28
  $region27: #{classifier_forward.1} parent=0 // pred_region
    _
  $region28: #{classifier_forward.1} parent=0 // pred_fallthru
    _
  // Predicated region
  $region29: #{classifier_forward.1} parent=0 // pred_check
    _
  $region30: #{classifier_forward.1} parent=0 // pred_check_branch
    %1677 = sbr.rel (0) target = $region32
  $region31: #{classifier_forward.1} parent=0 // pred_region
    _
  $region32: #{classifier_forward.1} parent=0 // pred_fallthru
    _

</llo_original>
